<compile_context>
chip_gen: v5e
topology: v5e:2x2
jax: 0.10.0
libtpu: 0.0.40
codegen_flags: <defaults>
</compile_context>

<pallas_src>
import functools

import jax
import jax.numpy as jnp
from jax.experimental import pallas as pl
from jax.experimental.pallas import tpu as pltpu


# ----------------------------------------------------------------------------
# Fused whole-model Pallas kernel (one grid step == one encoder layer)
# ----------------------------------------------------------------------------
def _ihs_bert_kernel(x_emb_ref, mask_ref, key_blk_ref, blk_sum_ref,
                     emb_g_ref, emb_b_ref,
                     wqkv_ref, bqkv_ref, wo_ref, bo_ref,
                     ln1_g_ref, ln1_b_ref,
                     w1_ref, b1_ref, w2_ref, b2_ref,
                     ln2_g_ref, ln2_b_ref,
                     pool_w_ref, pool_b_ref,
                     cw1_ref, cb1_ref, cw2_ref, cb2_ref,
                     out_ref, x_state,
                     *, num_heads, batch, seq, eps):
    li = pl.program_id(0)
    H = x_emb_ref.shape[-1]
    Dh = H // num_heads
    J = num_heads * seq                       # head-blocked key axis: j = h*seq + k
    scale = 1.0 / (Dh ** 0.5)
    bf16 = jnp.bfloat16

    def layer_norm(v, g, b):
        mu = jnp.mean(v, axis=-1, keepdims=True)
        var = jnp.mean(jnp.square(v - mu), axis=-1, keepdims=True)
        return (v - mu) * jax.lax.rsqrt(var + eps) * g + b

    def mxu(a, w):
        # bf16 MXU inputs, f32 accumulation; elementwise math stays f32.
        return jnp.dot(a.astype(bf16), w, preferred_element_type=jnp.float32)

    def gelu_exact(v):
        # Exact (erf-based) BERT GELU.  erf is evaluated with the
        # Abramowitz-Stegun 7.1.26 polynomial (|err| <= 1.5e-7, f32-accurate)
        # so only exp / divide -- ops with guaranteed Mosaic lowerings -- are used.
        z = v * 0.7071067811865476
        az = jnp.abs(z)
        t = 1.0 / (1.0 + 0.3275911 * az)
        poly = ((((1.061405429 * t - 1.453152027) * t + 1.421413741) * t
                 - 0.284496736) * t + 0.254829592) * t
        erf_abs = 1.0 - poly * jnp.exp(-az * az)
        erf_z = jnp.where(z < 0.0, -erf_abs, erf_abs)
        return 0.5 * v * (1.0 + erf_z)

    # ---- first grid step: embedding LayerNorm into the resident activations ----
    @pl.when(li == 0)
    def _():
        x_state[...] = layer_norm(x_emb_ref[...], emb_g_ref[...], emb_b_ref[...])
        out_ref[...] = jnp.zeros_like(out_ref)

    x = x_state[...]                                            # (B*S, H) f32

    # ---- hoisted expansions (once per layer step, none per head) ----
    # additive key-padding bias replicated per head: lane j = h*seq + k -> bias[b, k]
    mask_rep = jnp.concatenate([mask_ref[...]] * num_heads, axis=-1)          # (B, J)
    mask_full = jax.lax.broadcast_in_dim(mask_rep, (batch, seq, J), (0, 2))   # (B, S, J)
    key_blk = jax.lax.broadcast_in_dim(key_blk_ref[...], (batch, J, H), (1, 2))

    # ---- self-attention: all heads via two batched einsums (head-blocked K/V) ----
    qkv = mxu(x, wqkv_ref[0]) + bqkv_ref[0]                     # (B*S, 3H) f32
    q = qkv[:, :H].reshape(batch, seq, H)
    k = qkv[:, H:2 * H].reshape(batch, seq, H)
    v = qkv[:, 2 * H:].reshape(batch, seq, H)
    # row j = h*seq + k holds key/value k, zeroed outside head h's feature block
    k_exp = jnp.concatenate([k] * num_heads, axis=1) * key_blk                # (B, J, H)
    v_exp = jnp.concatenate([v] * num_heads, axis=1) * key_blk                # (B, J, H)

    s = jnp.einsum("bqe,bje->bqj", q.astype(bf16), k_exp.astype(bf16),
                   preferred_element_type=jnp.float32) * scale                # (B, S, J)
    s = s + mask_full
    # per-(b,q) global max: a constant offset within each head block leaves its softmax unchanged
    s = s - jnp.max(s, axis=-1, keepdims=True)
    p_un = jnp.exp(s).reshape(batch * seq, J)
    # per-head denominators replicated back onto each head's lanes via a tiny block-sum matmul
    denom = jnp.dot(p_un, blk_sum_ref[...], preferred_element_type=jnp.float32)
    p = (p_un / denom).reshape(batch, seq, J)                   # exact softmax division
    ctx = jnp.einsum("bqj,bje->bqe", p.astype(bf16), v_exp.astype(bf16),
                     preferred_element_type=jnp.float32)        # (B, S, H): heads already merged
    attn_out = mxu(ctx.reshape(batch * seq, H), wo_ref[0]) + bo_ref[0]
    x = layer_norm(attn_out + x, ln1_g_ref[0], ln1_b_ref[0])

    # ---- feed-forward ----
    ffn = mxu(x, w1_ref[0]) + b1_ref[0]
    ffn = gelu_exact(ffn)
    ffn = mxu(ffn, w2_ref[0]) + b2_ref[0]
    x = layer_norm(ffn + x, ln2_g_ref[0], ln2_b_ref[0])
    x_state[...] = x                                            # carry to next grid step

    # ---- last grid step: BERT pooler on the [CLS] rows + classifier head ----
    @pl.when(li == pl.num_programs(0) - 1)
    def _():
        cls = x.reshape(batch, seq, H)[:, 0, :]                 # static CLS slice (no selector matmul)
        pooled = jnp.tanh(mxu(cls, pool_w_ref[...]) + pool_b_ref[...])
        # dropout(encoding): eval-mode identity
        hidden = jnp.maximum(mxu(pooled, cw1_ref[...]) + cb1_ref[...], 0.0)
        logits = mxu(hidden, cw2_ref[...]) + cb2_ref[...]       # (B, 128) lane-dense, zero-padded
        out_ref[...] = logits.astype(out_ref.dtype)


# ----------------------------------------------------------------------------
# Parameter construction (deterministic, synthetic; shapes match a tiny BERT)
# ----------------------------------------------------------------------------
CFG = dict(vocab_size=100, hidden_size=32, num_layers=2, num_heads=4,
           intermediate_size=64, max_position=32, type_vocab_size=2,
           clf_linear_size=300, out_size=6)


def _round_up(x, m):
    return ((x + m - 1) // m) * m


def init_params(key, cfg):
    H, I, L = cfg["hidden_size"], cfg["intermediate_size"], cfg["num_layers"]
    C, O = cfg["clf_linear_size"], cfg["out_size"]
    C_pad, O_pad = _round_up(C, 128), _round_up(O, 128)         # 300->384, 6->128
    mmdt = jnp.bfloat16                                          # matmul-weight storage dtype

    def dense(k, fan_in, fan_out):
        w = jax.random.normal(k, (fan_in, fan_out), jnp.float32) * 0.02
        return w, jnp.zeros((fan_out,), jnp.float32)

    keys = jax.random.split(key, 6 + L)
    p = {
        "word_emb": jax.random.normal(keys[0], (cfg["vocab_size"], H), jnp.float32) * 0.02,
        "pos_emb": jax.random.normal(keys[1], (cfg["max_position"], H), jnp.float32) * 0.02,
        "type_emb": jax.random.normal(keys[2], (cfg["type_vocab_size"], H), jnp.float32) * 0.02,
        "emb_ln_g": jnp.ones((1, H), jnp.float32),
        "emb_ln_b": jnp.zeros((1, H), jnp.float32),
    }

    wqkv, bqkv, wo, bo, ln1g, ln1b, w1, b1, w2, b2, ln2g, ln2b = ([] for _ in range(12))
    for li in range(L):
        k = jax.random.split(keys[3 + li], 6)
        wq, _ = dense(k[0], H, H)
        wk, _ = dense(k[1], H, H)
        wv, _ = dense(k[2], H, H)
        wqkv.append(jnp.concatenate([wq, wk, wv], axis=1))       # fused (H, 3H)
        bqkv.append(jnp.zeros((1, 3 * H), jnp.float32))
        w_o, _ = dense(k[3], H, H)
        wo.append(w_o); bo.append(jnp.zeros((1, H), jnp.float32))
        ln1g.append(jnp.ones((1, H), jnp.float32)); ln1b.append(jnp.zeros((1, H), jnp.float32))
        w_1, _ = dense(k[4], H, I)
        w1.append(w_1); b1.append(jnp.zeros((1, I), jnp.float32))
        w_2, _ = dense(k[5], I, H)
        w2.append(w_2); b2.append(jnp.zeros((1, H), jnp.float32))
        ln2g.append(jnp.ones((1, H), jnp.float32)); ln2b.append(jnp.zeros((1, H), jnp.float32))

    stack = lambda xs: jnp.stack(xs, axis=0)
    p.update(
        wqkv=stack(wqkv).astype(mmdt), bqkv=stack(bqkv),
        wo=stack(wo).astype(mmdt), bo=stack(bo),
        ln1_g=stack(ln1g), ln1_b=stack(ln1b),
        w1=stack(w1).astype(mmdt), b1=stack(b1),
        w2=stack(w2).astype(mmdt), b2=stack(b2),
        ln2_g=stack(ln2g), ln2_b=stack(ln2b),
    )

    kp, kc1, kc2 = keys[3 + L], keys[4 + L], keys[5 + L]
    pw, pb = dense(kp, H, H)
    p["pooler_w"] = pw.astype(mmdt)
    p["pooler_b"] = pb.reshape(1, H)

    cw1, cb1 = dense(kc1, H, C)
    cw2, cb2 = dense(kc2, C, O)
    # Zero-pad to lane-dense shapes; padded hidden cols give relu(0)=0 and padded
    # w2 rows/cols are zero, so logits[:, :O] equal the unpadded math (up to bf16
    # rounding of the stored weights).
    p["clf_w1"] = jnp.zeros((H, C_pad), jnp.float32).at[:, :C].set(cw1).astype(mmdt)
    p["clf_b1"] = jnp.zeros((1, C_pad), jnp.float32).at[:, :C].set(cb1)
    p["clf_w2"] = jnp.zeros((C_pad, O_pad), jnp.float32).at[:C, :O].set(cw2).astype(mmdt)
    p["clf_b2"] = jnp.zeros((1, O_pad), jnp.float32).at[:, :O].set(cb2)
    return p


# ----------------------------------------------------------------------------
# Forward pass (mirrors IHSPredictorBERT.forward)
# ----------------------------------------------------------------------------
def ihs_predictor_bert_forward(params, cfg, input_ids, attention_mask=None,
                               token_type_ids=None):
    B, S = input_ids.shape
    H, Hn, L = cfg["hidden_size"], cfg["num_heads"], cfg["num_layers"]
    Dh = H // Hn
    J = Hn * S
    if attention_mask is None:
        attention_mask = jnp.ones((B, S), jnp.int32)
    if token_type_ids is None:
        token_type_ids = jnp.zeros((B, S), jnp.int32)

    # --- BERT embedding table gathers (XLA glue; everything after runs in Pallas) ---
    pos_ids = jnp.arange(S)
    emb = (params["word_emb"][input_ids]
           + params["pos_emb"][pos_ids][None, :, :]
           + params["type_emb"][token_type_ids])
    x_emb = emb.reshape(B * S, H).astype(jnp.float32)

    # HF extended attention mask: (1 - mask) * -10000 as a 2-D (B, S) additive bias.
    mask_bias = (1.0 - attention_mask.astype(jnp.float32)) * -10000.0

    # Structural constants of the head-blocked attention layout (fetched once).
    j_head = jnp.arange(J, dtype=jnp.int32) // S            # head owning key-slot row j
    e_head = jnp.arange(H, dtype=jnp.int32) // Dh            # head owning feature column e
    key_blk = (j_head[:, None] == e_head[None, :]).astype(jnp.float32)   # (J, H)
    blk_sum = (j_head[:, None] == j_head[None, :]).astype(jnp.float32)   # (J, J)

    o_pad = params["clf_b2"].shape[-1]

    def layer_spec(a):        # stacked per-layer weights: stream one layer per grid step
        return pl.BlockSpec((1,) + a.shape[1:], lambda li: (li, 0, 0))

    def const_spec(a):        # layer-invariant: constant index map -> fetched once, stays resident
        zeros = (0,) * a.ndim
        return pl.BlockSpec(a.shape, lambda li, zeros=zeros: zeros)

    operands = (x_emb, mask_bias, key_blk, blk_sum,
                params["emb_ln_g"], params["emb_ln_b"],
                params["wqkv"], params["bqkv"], params["wo"], params["bo"],
                params["ln1_g"], params["ln1_b"],
                params["w1"], params["b1"], params["w2"], params["b2"],
                params["ln2_g"], params["ln2_b"],
                params["pooler_w"], params["pooler_b"],
                params["clf_w1"], params["clf_b1"], params["clf_w2"], params["clf_b2"])

    in_specs = [
        const_spec(x_emb), const_spec(mask_bias), const_spec(key_blk), const_spec(blk_sum),
        const_spec(params["emb_ln_g"]), const_spec(params["emb_ln_b"]),
        layer_spec(params["wqkv"]), layer_spec(params["bqkv"]),
        layer_spec(params["wo"]), layer_spec(params["bo"]),
        layer_spec(params["ln1_g"]), layer_spec(params["ln1_b"]),
        layer_spec(params["w1"]), layer_spec(params["b1"]),
        layer_spec(params["w2"]), layer_spec(params["b2"]),
        layer_spec(params["ln2_g"]), layer_spec(params["ln2_b"]),
        const_spec(params["pooler_w"]), const_spec(params["pooler_b"]),
        const_spec(params["clf_w1"]), const_spec(params["clf_b1"]),
        const_spec(params["clf_w2"]), const_spec(params["clf_b2"]),
    ]

    kernel = functools.partial(_ihs_bert_kernel, num_heads=Hn, batch=B, seq=S, eps=1e-12)

    logits_pad = pl.pallas_call(
        kernel,
        out_shape=jax.ShapeDtypeStruct((B, o_pad), jnp.float32),
        grid_spec=pltpu.PrefetchScalarGridSpec(
            num_scalar_prefetch=0,
            grid=(L,),
            in_specs=in_specs,
            out_specs=pl.BlockSpec((B, o_pad), lambda li: (0, 0)),
            scratch_shapes=[pltpu.VMEM((B * S, H), jnp.float32)],   # residual stream carried across layers
        ),
        compiler_params=pltpu.CompilerParams(
            dimension_semantics=("arbitrary",),   # layer axis is sequential (carries the residual stream)
            vmem_limit_bytes=32 * 1024 * 1024,
        ),
    )(*operands)

    return logits_pad[:, :cfg["out_size"]]


# ----------------------------------------------------------------------------
if __name__ == "__main__":
    cfg = CFG
    key = jax.random.PRNGKey(0)
    k_params, k_ids = jax.random.split(key)
    params = init_params(k_params, cfg)

    B, S = 2, 8
    input_ids = jax.random.randint(k_ids, (B, S), 0, cfg["vocab_size"], dtype=jnp.int32)
    attention_mask = jnp.array([[1, 1, 1, 1, 1, 1, 1, 1],
                                [1, 1, 1, 1, 1, 1, 0, 0]], dtype=jnp.int32)
    token_type_ids = jnp.zeros((B, S), jnp.int32)

    fwd = jax.jit(lambda p, ids, am, tt: ihs_predictor_bert_forward(p, cfg, ids, am, tt))
    out = fwd(params, input_ids, attention_mask, token_type_ids)
    out = jax.block_until_ready(out)
    assert out.shape == (B, cfg["out_size"]) and out.dtype == jnp.float32
    print("KERNEL_OK")
</pallas_src>

<mosaic_0001>
module attributes {stable_mosaic.version = 11 : i64} {
  func.func @_ihs_bert_kernel(%arg0: i32, %arg1: memref<16x32xf32, #tpu.memory_space<vmem>>, %arg2: memref<2x8xf32, #tpu.memory_space<vmem>>, %arg3: memref<32x32xf32, #tpu.memory_space<vmem>>, %arg4: memref<32x32xf32, #tpu.memory_space<vmem>>, %arg5: memref<1x32xf32, #tpu.memory_space<vmem>>, %arg6: memref<1x32xf32, #tpu.memory_space<vmem>>, %arg7: memref<1x32x96xbf16, #tpu.memory_space<vmem>>, %arg8: memref<1x1x96xf32, #tpu.memory_space<vmem>>, %arg9: memref<1x32x32xbf16, #tpu.memory_space<vmem>>, %arg10: memref<1x1x32xf32, #tpu.memory_space<vmem>>, %arg11: memref<1x1x32xf32, #tpu.memory_space<vmem>>, %arg12: memref<1x1x32xf32, #tpu.memory_space<vmem>>, %arg13: memref<1x32x64xbf16, #tpu.memory_space<vmem>>, %arg14: memref<1x1x64xf32, #tpu.memory_space<vmem>>, %arg15: memref<1x64x32xbf16, #tpu.memory_space<vmem>>, %arg16: memref<1x1x32xf32, #tpu.memory_space<vmem>>, %arg17: memref<1x1x32xf32, #tpu.memory_space<vmem>>, %arg18: memref<1x1x32xf32, #tpu.memory_space<vmem>>, %arg19: memref<32x32xbf16, #tpu.memory_space<vmem>>, %arg20: memref<1x32xf32, #tpu.memory_space<vmem>>, %arg21: memref<32x384xbf16, #tpu.memory_space<vmem>>, %arg22: memref<1x384xf32, #tpu.memory_space<vmem>>, %arg23: memref<384x128xbf16, #tpu.memory_space<vmem>>, %arg24: memref<1x128xf32, #tpu.memory_space<vmem>>, %arg25: memref<2x128xf32, #tpu.memory_space<vmem>>, %arg26: memref<16x32xf32, #tpu.memory_space<vmem>>) attributes {dimension_semantics = [#tpu.dimension_semantics<arbitrary>], iteration_bounds = array<i64: 2>, scalar_prefetch = 0 : i64, scratch_operands = 1 : i64, tpu.core_type = #tpu.core_type<tc>, window_params = [{pipeline_mode = #tpu.pipeline_mode<synchronous>, transform_indices = @transform_0, window_bounds = array<i64: 16, 32>}, {pipeline_mode = #tpu.pipeline_mode<synchronous>, transform_indices = @transform_1, window_bounds = array<i64: 2, 8>}, {pipeline_mode = #tpu.pipeline_mode<synchronous>, transform_indices = @transform_2, window_bounds = array<i64: 32, 32>}, {pipeline_mode = #tpu.pipeline_mode<synchronous>, transform_indices = @transform_3, window_bounds = array<i64: 32, 32>}, {pipeline_mode = #tpu.pipeline_mode<synchronous>, transform_indices = @transform_4, window_bounds = array<i64: 1, 32>}, {pipeline_mode = #tpu.pipeline_mode<synchronous>, transform_indices = @transform_5, window_bounds = array<i64: 1, 32>}, {transform_indices = @transform_6, window_bounds = array<i64: 1, 32, 96>}, {transform_indices = @transform_7, window_bounds = array<i64: 1, 1, 96>}, {transform_indices = @transform_8, window_bounds = array<i64: 1, 32, 32>}, {transform_indices = @transform_9, window_bounds = array<i64: 1, 1, 32>}, {transform_indices = @transform_10, window_bounds = array<i64: 1, 1, 32>}, {transform_indices = @transform_11, window_bounds = array<i64: 1, 1, 32>}, {transform_indices = @transform_12, window_bounds = array<i64: 1, 32, 64>}, {transform_indices = @transform_13, window_bounds = array<i64: 1, 1, 64>}, {transform_indices = @transform_14, window_bounds = array<i64: 1, 64, 32>}, {transform_indices = @transform_15, window_bounds = array<i64: 1, 1, 32>}, {transform_indices = @transform_16, window_bounds = array<i64: 1, 1, 32>}, {transform_indices = @transform_17, window_bounds = array<i64: 1, 1, 32>}, {pipeline_mode = #tpu.pipeline_mode<synchronous>, transform_indices = @transform_18, window_bounds = array<i64: 32, 32>}, {pipeline_mode = #tpu.pipeline_mode<synchronous>, transform_indices = @transform_19, window_bounds = array<i64: 1, 32>}, {pipeline_mode = #tpu.pipeline_mode<synchronous>, transform_indices = @transform_20, window_bounds = array<i64: 32, 384>}, {pipeline_mode = #tpu.pipeline_mode<synchronous>, transform_indices = @transform_21, window_bounds = array<i64: 1, 384>}, {pipeline_mode = #tpu.pipeline_mode<synchronous>, transform_indices = @transform_22, window_bounds = array<i64: 384, 128>}, {pipeline_mode = #tpu.pipeline_mode<synchronous>, transform_indices = @transform_23, window_bounds = array<i64: 1, 128>}, {pipeline_mode = #tpu.pipeline_mode<synchronous>, transform_indices = @transform_24, window_bounds = array<i64: 2, 128>}]} {
    %c0_i32 = arith.constant 0 : i32
    %0 = arith.cmpi eq, %arg0, %c0_i32 : i32
    %1 = arith.extui %0 : i1 to i32
    %c0_i32_0 = arith.constant 0 : i32
    %2 = arith.cmpi ne, %1, %c0_i32_0 : i32
    scf.if %2 {
      %c0_80 = arith.constant 0 : index
      %c0_81 = arith.constant 0 : index
      %171 = vector.load %arg1[%c0_80, %c0_81] : memref<16x32xf32, #tpu.memory_space<vmem>>, vector<16x32xf32>
      %c0_82 = arith.constant 0 : index
      %c0_83 = arith.constant 0 : index
      %172 = vector.load %arg5[%c0_82, %c0_83] : memref<1x32xf32, #tpu.memory_space<vmem>>, vector<1x32xf32>
      %c0_84 = arith.constant 0 : index
      %c0_85 = arith.constant 0 : index
      %173 = vector.load %arg6[%c0_84, %c0_85] : memref<1x32xf32, #tpu.memory_space<vmem>>, vector<1x32xf32>
      %cst_86 = arith.constant dense<0.000000e+00> : vector<16xf32>
      %174 = vector.multi_reduction <add>, %171, %cst_86 [1] : vector<16x32xf32> to vector<16xf32>
      %175 = vector.shape_cast %174 : vector<16xf32> to vector<16x1xf32>
      %cst_87 = arith.constant 3.200000e+01 : f32
      %176 = vector.broadcast %cst_87 : f32 to vector<16x1xf32>
      %177 = arith.divf %175, %176 : vector<16x1xf32>
      %178 = vector.broadcast %177 : vector<16x1xf32> to vector<16x32xf32>
      %179 = arith.subf %171, %178 : vector<16x32xf32>
      %180 = arith.mulf %179, %179 : vector<16x32xf32>
      %cst_88 = arith.constant dense<0.000000e+00> : vector<16xf32>
      %181 = vector.multi_reduction <add>, %180, %cst_88 [1] : vector<16x32xf32> to vector<16xf32>
      %182 = vector.shape_cast %181 : vector<16xf32> to vector<16x1xf32>
      %cst_89 = arith.constant 3.200000e+01 : f32
      %183 = vector.broadcast %cst_89 : f32 to vector<16x1xf32>
      %184 = arith.divf %182, %183 : vector<16x1xf32>
      %185 = vector.broadcast %177 : vector<16x1xf32> to vector<16x32xf32>
      %186 = arith.subf %171, %185 : vector<16x32xf32>
      %cst_90 = arith.constant 9.99999996E-13 : f32
      %187 = vector.broadcast %cst_90 : f32 to vector<16x1xf32>
      %188 = arith.addf %184, %187 : vector<16x1xf32>
      %189 = math.rsqrt %188 : vector<16x1xf32>
      %190 = vector.broadcast %189 : vector<16x1xf32> to vector<16x32xf32>
      %191 = arith.mulf %186, %190 : vector<16x32xf32>
      %192 = vector.broadcast %172 : vector<1x32xf32> to vector<16x32xf32>
      %193 = arith.mulf %191, %192 : vector<16x32xf32>
      %194 = vector.broadcast %173 : vector<1x32xf32> to vector<16x32xf32>
      %195 = arith.addf %193, %194 : vector<16x32xf32>
      %c0_91 = arith.constant 0 : index
      %c0_92 = arith.constant 0 : index
      %196 = vector.load %arg26[%c0_91, %c0_92] : memref<16x32xf32, #tpu.memory_space<vmem>>, vector<16x32xf32>
      tpu.vector_store %arg26[%c0_91, %c0_92], %195 {strides = array<i32>} : memref<16x32xf32, #tpu.memory_space<vmem>>, vector<16x32xf32>,
      %cst_93 = arith.constant 0.000000e+00 : f32
      %197 = vector.broadcast %cst_93 : f32 to vector<2x128xf32>
      %c0_94 = arith.constant 0 : index
      %c0_95 = arith.constant 0 : index
      %198 = vector.load %arg25[%c0_94, %c0_95] : memref<2x128xf32, #tpu.memory_space<vmem>>, vector<2x128xf32>
      tpu.vector_store %arg25[%c0_94, %c0_95], %197 {strides = array<i32>} : memref<2x128xf32, #tpu.memory_space<vmem>>, vector<2x128xf32>,
    } else {
    }
    %c0 = arith.constant 0 : index
    %c0_1 = arith.constant 0 : index
    %3 = vector.load %arg26[%c0, %c0_1] : memref<16x32xf32, #tpu.memory_space<vmem>>, vector<16x32xf32>
    %c0_2 = arith.constant 0 : index
    %c0_3 = arith.constant 0 : index
    %4 = vector.load %arg2[%c0_2, %c0_3] : memref<2x8xf32, #tpu.memory_space<vmem>>, vector<2x8xf32>
    %5 = tpu.concatenate %4, %4, %4, %4 in 1 : vector<2x8xf32>, vector<2x8xf32>, vector<2x8xf32>, vector<2x8xf32> -> vector<2x32xf32>
    %6 = vector.shape_cast %5 : vector<2x32xf32> to vector<2x1x32xf32>
    %7 = vector.broadcast %6 : vector<2x1x32xf32> to vector<2x8x32xf32>
    %c0_4 = arith.constant 0 : index
    %c0_5 = arith.constant 0 : index
    %8 = vector.load %arg3[%c0_4, %c0_5] : memref<32x32xf32, #tpu.memory_space<vmem>>, vector<32x32xf32>
    %9 = vector.shape_cast %8 : vector<32x32xf32> to vector<1x32x32xf32>
    %10 = vector.broadcast %9 : vector<1x32x32xf32> to vector<2x32x32xf32>
    %c0_6 = arith.constant 0 : index
    %c0_7 = arith.constant 0 : index
    %c0_8 = arith.constant 0 : index
    %11 = vector.load %arg7[%c0_6, %c0_7, %c0_8] : memref<1x32x96xbf16, #tpu.memory_space<vmem>>, vector<1x32x96xbf16>
    %12 = vector.shape_cast %11 : vector<1x32x96xbf16> to vector<32x96xbf16>
    %13 = arith.truncf %3 : vector<16x32xf32> to vector<16x32xbf16>
    %cst = arith.constant dense<0.000000e+00> : vector<16x96xf32>
    %14 = tpu.matmul %13, %12, %cst {dimension_numbers = #tpu.dot_dimension_numbers<[1], [0], [0], [1], [0, 0, 1, 1], [], []>} : vector<16x32xbf16>, vector<32x96xbf16>, vector<16x96xf32> -> vector<16x96xf32>
    %c0_9 = arith.constant 0 : index
    %c0_10 = arith.constant 0 : index
    %c0_11 = arith.constant 0 : index
    %15 = vector.load %arg8[%c0_9, %c0_10, %c0_11] : memref<1x1x96xf32, #tpu.memory_space<vmem>>, vector<1x1x96xf32>
    %16 = vector.shape_cast %15 : vector<1x1x96xf32> to vector<1x96xf32>
    %17 = vector.broadcast %16 : vector<1x96xf32> to vector<16x96xf32>
    %18 = arith.addf %14, %17 : vector<16x96xf32>
    %19 = vector.extract_strided_slice %18 {offsets = [0, 0], sizes = [16, 32], strides = [1, 1]} : vector<16x96xf32> to vector<16x32xf32>
    %20 = vector.shape_cast %19 : vector<16x32xf32> to vector<2x8x32xf32>
    %21 = vector.extract_strided_slice %18 {offsets = [0, 32], sizes = [16, 32], strides = [1, 1]} : vector<16x96xf32> to vector<16x32xf32>
    %22 = vector.shape_cast %21 : vector<16x32xf32> to vector<2x8x32xf32>
    %23 = vector.extract_strided_slice %18 {offsets = [0, 64], sizes = [16, 32], strides = [1, 1]} : vector<16x96xf32> to vector<16x32xf32>
    %24 = vector.shape_cast %23 : vector<16x32xf32> to vector<2x8x32xf32>
    %25 = tpu.concatenate %22, %22, %22, %22 in 1 : vector<2x8x32xf32>, vector<2x8x32xf32>, vector<2x8x32xf32>, vector<2x8x32xf32> -> vector<2x32x32xf32>
    %26 = arith.mulf %25, %10 : vector<2x32x32xf32>
    %27 = tpu.concatenate %24, %24, %24, %24 in 1 : vector<2x8x32xf32>, vector<2x8x32xf32>, vector<2x8x32xf32>, vector<2x8x32xf32> -> vector<2x32x32xf32>
    %28 = arith.mulf %27, %10 : vector<2x32x32xf32>
    %29 = arith.truncf %20 : vector<2x8x32xf32> to vector<2x8x32xbf16>
    %30 = arith.truncf %26 : vector<2x32x32xf32> to vector<2x32x32xbf16>
    "tpu.trace_start"() <{level = 10 : i32, message = "bqe,bje->bqj"}> : () -> ()
    %cst_12 = arith.constant dense<0.000000e+00> : vector<2x8x32xf32>
    %31 = tpu.matmul %29, %30, %cst_12 {dimension_numbers = #tpu.dot_dimension_numbers<[2], [2], [1], [1], [0, 0, 0, 1, 1, 1], [0], [0]>} : vector<2x8x32xbf16>, vector<2x32x32xbf16>, vector<2x8x32xf32> -> vector<2x8x32xf32>
    "tpu.trace_stop"() : () -> ()
    %cst_13 = arith.constant 0.353553385 : f32
    %32 = vector.broadcast %cst_13 : f32 to vector<2x8x32xf32>
    %33 = arith.mulf %31, %32 : vector<2x8x32xf32>
    %34 = arith.addf %33, %7 : vector<2x8x32xf32>
    %cst_14 = arith.constant dense<0xFF800000> : vector<2x8xf32>
    %35 = vector.multi_reduction <maximumf>, %34, %cst_14 [2] : vector<2x8x32xf32> to vector<2x8xf32>
    %36 = vector.shape_cast %35 : vector<2x8xf32> to vector<2x8x1xf32>
    %37 = vector.broadcast %36 : vector<2x8x1xf32> to vector<2x8x32xf32>
    %38 = arith.subf %34, %37 : vector<2x8x32xf32>
    %39 = math.exp %38 : vector<2x8x32xf32>
    %40 = vector.shape_cast %39 : vector<2x8x32xf32> to vector<16x32xf32>
    %c0_15 = arith.constant 0 : index
    %c0_16 = arith.constant 0 : index
    %41 = vector.load %arg4[%c0_15, %c0_16] : memref<32x32xf32, #tpu.memory_space<vmem>>, vector<32x32xf32>
    %cst_17 = arith.constant dense<0.000000e+00> : vector<16x32xf32>
    %42 = tpu.matmul %40, %41, %cst_17 {dimension_numbers = #tpu.dot_dimension_numbers<[1], [0], [0], [1], [0, 0, 1, 1], [], []>} : vector<16x32xf32>, vector<32x32xf32>, vector<16x32xf32> -> vector<16x32xf32>
    %43 = arith.divf %40, %42 : vector<16x32xf32>
    %44 = vector.shape_cast %43 : vector<16x32xf32> to vector<2x8x32xf32>
    %45 = arith.truncf %44 : vector<2x8x32xf32> to vector<2x8x32xbf16>
    %46 = arith.truncf %28 : vector<2x32x32xf32> to vector<2x32x32xbf16>
    "tpu.trace_start"() <{level = 10 : i32, message = "bqj,bje->bqe"}> : () -> ()
    %cst_18 = arith.constant dense<0.000000e+00> : vector<2x8x32xf32>
    %47 = tpu.matmul %45, %46, %cst_18 {dimension_numbers = #tpu.dot_dimension_numbers<[2], [1], [1], [2], [0, 0, 0, 1, 1, 2], [0], [0]>} : vector<2x8x32xbf16>, vector<2x32x32xbf16>, vector<2x8x32xf32> -> vector<2x8x32xf32>
    "tpu.trace_stop"() : () -> ()
    %48 = vector.shape_cast %47 : vector<2x8x32xf32> to vector<16x32xf32>
    %c0_19 = arith.constant 0 : index
    %c0_20 = arith.constant 0 : index
    %c0_21 = arith.constant 0 : index
    %49 = vector.load %arg9[%c0_19, %c0_20, %c0_21] : memref<1x32x32xbf16, #tpu.memory_space<vmem>>, vector<1x32x32xbf16>
    %50 = vector.shape_cast %49 : vector<1x32x32xbf16> to vector<32x32xbf16>
    %51 = arith.truncf %48 : vector<16x32xf32> to vector<16x32xbf16>
    %cst_22 = arith.constant dense<0.000000e+00> : vector<16x32xf32>
    %52 = tpu.matmul %51, %50, %cst_22 {dimension_numbers = #tpu.dot_dimension_numbers<[1], [0], [0], [1], [0, 0, 1, 1], [], []>} : vector<16x32xbf16>, vector<32x32xbf16>, vector<16x32xf32> -> vector<16x32xf32>
    %c0_23 = arith.constant 0 : index
    %c0_24 = arith.constant 0 : index
    %c0_25 = arith.constant 0 : index
    %53 = vector.load %arg10[%c0_23, %c0_24, %c0_25] : memref<1x1x32xf32, #tpu.memory_space<vmem>>, vector<1x1x32xf32>
    %54 = vector.shape_cast %53 : vector<1x1x32xf32> to vector<1x32xf32>
    %55 = vector.broadcast %54 : vector<1x32xf32> to vector<16x32xf32>
    %56 = arith.addf %52, %55 : vector<16x32xf32>
    %57 = arith.addf %56, %3 : vector<16x32xf32>
    %c0_26 = arith.constant 0 : index
    %c0_27 = arith.constant 0 : index
    %c0_28 = arith.constant 0 : index
    %58 = vector.load %arg11[%c0_26, %c0_27, %c0_28] : memref<1x1x32xf32, #tpu.memory_space<vmem>>, vector<1x1x32xf32>
    %59 = vector.shape_cast %58 : vector<1x1x32xf32> to vector<1x32xf32>
    %c0_29 = arith.constant 0 : index
    %c0_30 = arith.constant 0 : index
    %c0_31 = arith.constant 0 : index
    %60 = vector.load %arg12[%c0_29, %c0_30, %c0_31] : memref<1x1x32xf32, #tpu.memory_space<vmem>>, vector<1x1x32xf32>
    %61 = vector.shape_cast %60 : vector<1x1x32xf32> to vector<1x32xf32>
    %cst_32 = arith.constant dense<0.000000e+00> : vector<16xf32>
    %62 = vector.multi_reduction <add>, %57, %cst_32 [1] : vector<16x32xf32> to vector<16xf32>
    %63 = vector.shape_cast %62 : vector<16xf32> to vector<16x1xf32>
    %cst_33 = arith.constant 3.200000e+01 : f32
    %64 = vector.broadcast %cst_33 : f32 to vector<16x1xf32>
    %65 = arith.divf %63, %64 : vector<16x1xf32>
    %66 = vector.broadcast %65 : vector<16x1xf32> to vector<16x32xf32>
    %67 = arith.subf %57, %66 : vector<16x32xf32>
    %68 = arith.mulf %67, %67 : vector<16x32xf32>
    %cst_34 = arith.constant dense<0.000000e+00> : vector<16xf32>
    %69 = vector.multi_reduction <add>, %68, %cst_34 [1] : vector<16x32xf32> to vector<16xf32>
    %70 = vector.shape_cast %69 : vector<16xf32> to vector<16x1xf32>
    %cst_35 = arith.constant 3.200000e+01 : f32
    %71 = vector.broadcast %cst_35 : f32 to vector<16x1xf32>
    %72 = arith.divf %70, %71 : vector<16x1xf32>
    %73 = vector.broadcast %65 : vector<16x1xf32> to vector<16x32xf32>
    %74 = arith.subf %57, %73 : vector<16x32xf32>
    %cst_36 = arith.constant 9.99999996E-13 : f32
    %75 = vector.broadcast %cst_36 : f32 to vector<16x1xf32>
    %76 = arith.addf %72, %75 : vector<16x1xf32>
    %77 = math.rsqrt %76 : vector<16x1xf32>
    %78 = vector.broadcast %77 : vector<16x1xf32> to vector<16x32xf32>
    %79 = arith.mulf %74, %78 : vector<16x32xf32>
    %80 = vector.broadcast %59 : vector<1x32xf32> to vector<16x32xf32>
    %81 = arith.mulf %79, %80 : vector<16x32xf32>
    %82 = vector.broadcast %61 : vector<1x32xf32> to vector<16x32xf32>
    %83 = arith.addf %81, %82 : vector<16x32xf32>
    %c0_37 = arith.constant 0 : index
    %c0_38 = arith.constant 0 : index
    %c0_39 = arith.constant 0 : index
    %84 = vector.load %arg13[%c0_37, %c0_38, %c0_39] : memref<1x32x64xbf16, #tpu.memory_space<vmem>>, vector<1x32x64xbf16>
    %85 = vector.shape_cast %84 : vector<1x32x64xbf16> to vector<32x64xbf16>
    %86 = arith.truncf %83 : vector<16x32xf32> to vector<16x32xbf16>
    %cst_40 = arith.constant dense<0.000000e+00> : vector<16x64xf32>
    %87 = tpu.matmul %86, %85, %cst_40 {dimension_numbers = #tpu.dot_dimension_numbers<[1], [0], [0], [1], [0, 0, 1, 1], [], []>} : vector<16x32xbf16>, vector<32x64xbf16>, vector<16x64xf32> -> vector<16x64xf32>
    %c0_41 = arith.constant 0 : index
    %c0_42 = arith.constant 0 : index
    %c0_43 = arith.constant 0 : index
    %88 = vector.load %arg14[%c0_41, %c0_42, %c0_43] : memref<1x1x64xf32, #tpu.memory_space<vmem>>, vector<1x1x64xf32>
    %89 = vector.shape_cast %88 : vector<1x1x64xf32> to vector<1x64xf32>
    %90 = vector.broadcast %89 : vector<1x64xf32> to vector<16x64xf32>
    %91 = arith.addf %87, %90 : vector<16x64xf32>
    %cst_44 = arith.constant 0.707106769 : f32
    %92 = vector.broadcast %cst_44 : f32 to vector<16x64xf32>
    %93 = arith.mulf %91, %92 : vector<16x64xf32>
    %94 = math.absf %93 : vector<16x64xf32>
    %cst_45 = arith.constant 0.327591091 : f32
    %95 = vector.broadcast %cst_45 : f32 to vector<16x64xf32>
    %96 = arith.mulf %95, %94 : vector<16x64xf32>
    %cst_46 = arith.constant 1.000000e+00 : f32
    %97 = vector.broadcast %cst_46 : f32 to vector<16x64xf32>
    %98 = arith.addf %97, %96 : vector<16x64xf32>
    %cst_47 = arith.constant 1.000000e+00 : f32
    %99 = vector.broadcast %cst_47 : f32 to vector<16x64xf32>
    %100 = arith.divf %99, %98 : vector<16x64xf32>
    %cst_48 = arith.constant 1.06140542 : f32
    %101 = vector.broadcast %cst_48 : f32 to vector<16x64xf32>
    %102 = arith.mulf %101, %100 : vector<16x64xf32>
    %cst_49 = arith.constant 1.45315206 : f32
    %103 = vector.broadcast %cst_49 : f32 to vector<16x64xf32>
    %104 = arith.subf %102, %103 : vector<16x64xf32>
    %105 = arith.mulf %104, %100 : vector<16x64xf32>
    %cst_50 = arith.constant 1.42141378 : f32
    %106 = vector.broadcast %cst_50 : f32 to vector<16x64xf32>
    %107 = arith.addf %105, %106 : vector<16x64xf32>
    %108 = arith.mulf %107, %100 : vector<16x64xf32>
    %cst_51 = arith.constant 0.284496725 : f32
    %109 = vector.broadcast %cst_51 : f32 to vector<16x64xf32>
    %110 = arith.subf %108, %109 : vector<16x64xf32>
    %111 = arith.mulf %110, %100 : vector<16x64xf32>
    %cst_52 = arith.constant 0.254829586 : f32
    %112 = vector.broadcast %cst_52 : f32 to vector<16x64xf32>
    %113 = arith.addf %111, %112 : vector<16x64xf32>
    %114 = arith.mulf %113, %100 : vector<16x64xf32>
    %cst_53 = arith.constant 0.000000e+00 : f32
    %115 = vector.broadcast %cst_53 : f32 to vector<16x64xf32>
    %116 = arith.subf %115, %94 : vector<16x64xf32>
    %117 = arith.mulf %116, %94 : vector<16x64xf32>
    %118 = math.exp %117 : vector<16x64xf32>
    %119 = arith.mulf %114, %118 : vector<16x64xf32>
    %cst_54 = arith.constant 1.000000e+00 : f32
    %120 = vector.broadcast %cst_54 : f32 to vector<16x64xf32>
    %121 = arith.subf %120, %119 : vector<16x64xf32>
    %cst_55 = arith.constant 0.000000e+00 : f32
    %122 = vector.broadcast %cst_55 : f32 to vector<16x64xf32>
    %123 = arith.cmpf olt, %93, %122 : vector<16x64xf32>
    %cst_56 = arith.constant 0.000000e+00 : f32
    %124 = vector.broadcast %cst_56 : f32 to vector<16x64xf32>
    %125 = arith.subf %124, %121 : vector<16x64xf32>
    %126 = arith.select %123, %125, %121 : vector<16x64xi1>, vector<16x64xf32>
    %cst_57 = arith.constant 5.000000e-01 : f32
    %127 = vector.broadcast %cst_57 : f32 to vector<16x64xf32>
    %128 = arith.mulf %127, %91 : vector<16x64xf32>
    %cst_58 = arith.constant 1.000000e+00 : f32
    %129 = vector.broadcast %cst_58 : f32 to vector<16x64xf32>
    %130 = arith.addf %129, %126 : vector<16x64xf32>
    %131 = arith.mulf %128, %130 : vector<16x64xf32>
    %c0_59 = arith.constant 0 : index
    %c0_60 = arith.constant 0 : index
    %c0_61 = arith.constant 0 : index
    %132 = vector.load %arg15[%c0_59, %c0_60, %c0_61] : memref<1x64x32xbf16, #tpu.memory_space<vmem>>, vector<1x64x32xbf16>
    %133 = vector.shape_cast %132 : vector<1x64x32xbf16> to vector<64x32xbf16>
    %134 = arith.truncf %131 : vector<16x64xf32> to vector<16x64xbf16>
    %cst_62 = arith.constant dense<0.000000e+00> : vector<16x32xf32>
    %135 = tpu.matmul %134, %133, %cst_62 {dimension_numbers = #tpu.dot_dimension_numbers<[1], [0], [0], [1], [0, 0, 1, 1], [], []>} : vector<16x64xbf16>, vector<64x32xbf16>, vector<16x32xf32> -> vector<16x32xf32>
    %c0_63 = arith.constant 0 : index
    %c0_64 = arith.constant 0 : index
    %c0_65 = arith.constant 0 : index
    %136 = vector.load %arg16[%c0_63, %c0_64, %c0_65] : memref<1x1x32xf32, #tpu.memory_space<vmem>>, vector<1x1x32xf32>
    %137 = vector.shape_cast %136 : vector<1x1x32xf32> to vector<1x32xf32>
    %138 = vector.broadcast %137 : vector<1x32xf32> to vector<16x32xf32>
    %139 = arith.addf %135, %138 : vector<16x32xf32>
    %140 = arith.addf %139, %83 : vector<16x32xf32>
    %c0_66 = arith.constant 0 : index
    %c0_67 = arith.constant 0 : index
    %c0_68 = arith.constant 0 : index
    %141 = vector.load %arg17[%c0_66, %c0_67, %c0_68] : memref<1x1x32xf32, #tpu.memory_space<vmem>>, vector<1x1x32xf32>
    %142 = vector.shape_cast %141 : vector<1x1x32xf32> to vector<1x32xf32>
    %c0_69 = arith.constant 0 : index
    %c0_70 = arith.constant 0 : index
    %c0_71 = arith.constant 0 : index
    %143 = vector.load %arg18[%c0_69, %c0_70, %c0_71] : memref<1x1x32xf32, #tpu.memory_space<vmem>>, vector<1x1x32xf32>
    %144 = vector.shape_cast %143 : vector<1x1x32xf32> to vector<1x32xf32>
    %cst_72 = arith.constant dense<0.000000e+00> : vector<16xf32>
    %145 = vector.multi_reduction <add>, %140, %cst_72 [1] : vector<16x32xf32> to vector<16xf32>
    %146 = vector.shape_cast %145 : vector<16xf32> to vector<16x1xf32>
    %cst_73 = arith.constant 3.200000e+01 : f32
    %147 = vector.broadcast %cst_73 : f32 to vector<16x1xf32>
    %148 = arith.divf %146, %147 : vector<16x1xf32>
    %149 = vector.broadcast %148 : vector<16x1xf32> to vector<16x32xf32>
    %150 = arith.subf %140, %149 : vector<16x32xf32>
    %151 = arith.mulf %150, %150 : vector<16x32xf32>
    %cst_74 = arith.constant dense<0.000000e+00> : vector<16xf32>
    %152 = vector.multi_reduction <add>, %151, %cst_74 [1] : vector<16x32xf32> to vector<16xf32>
    %153 = vector.shape_cast %152 : vector<16xf32> to vector<16x1xf32>
    %cst_75 = arith.constant 3.200000e+01 : f32
    %154 = vector.broadcast %cst_75 : f32 to vector<16x1xf32>
    %155 = arith.divf %153, %154 : vector<16x1xf32>
    %156 = vector.broadcast %148 : vector<16x1xf32> to vector<16x32xf32>
    %157 = arith.subf %140, %156 : vector<16x32xf32>
    %cst_76 = arith.constant 9.99999996E-13 : f32
    %158 = vector.broadcast %cst_76 : f32 to vector<16x1xf32>
    %159 = arith.addf %155, %158 : vector<16x1xf32>
    %160 = math.rsqrt %159 : vector<16x1xf32>
    %161 = vector.broadcast %160 : vector<16x1xf32> to vector<16x32xf32>
    %162 = arith.mulf %157, %161 : vector<16x32xf32>
    %163 = vector.broadcast %142 : vector<1x32xf32> to vector<16x32xf32>
    %164 = arith.mulf %162, %163 : vector<16x32xf32>
    %165 = vector.broadcast %144 : vector<1x32xf32> to vector<16x32xf32>
    %166 = arith.addf %164, %165 : vector<16x32xf32>
    %c0_77 = arith.constant 0 : index
    %c0_78 = arith.constant 0 : index
    %167 = vector.load %arg26[%c0_77, %c0_78] : memref<16x32xf32, #tpu.memory_space<vmem>>, vector<16x32xf32>
    tpu.vector_store %arg26[%c0_77, %c0_78], %166 {strides = array<i32>} : memref<16x32xf32, #tpu.memory_space<vmem>>, vector<16x32xf32>,
    %c1_i32 = arith.constant 1 : i32
    %168 = arith.cmpi eq, %arg0, %c1_i32 : i32
    %169 = arith.extui %168 : i1 to i32
    %c0_i32_79 = arith.constant 0 : i32
    %170 = arith.cmpi ne, %169, %c0_i32_79 : i32
    scf.if %170 {
      %171 = vector.shape_cast %166 : vector<16x32xf32> to vector<2x8x32xf32>
      %172 = vector.extract_strided_slice %171 {offsets = [0, 0, 0], sizes = [2, 1, 32], strides = [1, 1, 1]} : vector<2x8x32xf32> to vector<2x1x32xf32>
      %173 = vector.shape_cast %172 : vector<2x1x32xf32> to vector<2x32xf32>
      %c0_80 = arith.constant 0 : index
      %c0_81 = arith.constant 0 : index
      %174 = vector.load %arg19[%c0_80, %c0_81] : memref<32x32xbf16, #tpu.memory_space<vmem>>, vector<32x32xbf16>
      %175 = arith.truncf %173 : vector<2x32xf32> to vector<2x32xbf16>
      %cst_82 = arith.constant dense<0.000000e+00> : vector<2x32xf32>
      %176 = tpu.matmul %175, %174, %cst_82 {dimension_numbers = #tpu.dot_dimension_numbers<[1], [0], [0], [1], [0, 0, 1, 1], [], []>} : vector<2x32xbf16>, vector<32x32xbf16>, vector<2x32xf32> -> vector<2x32xf32>
      %c0_83 = arith.constant 0 : index
      %c0_84 = arith.constant 0 : index
      %177 = vector.load %arg20[%c0_83, %c0_84] : memref<1x32xf32, #tpu.memory_space<vmem>>, vector<1x32xf32>
      %178 = vector.broadcast %177 : vector<1x32xf32> to vector<2x32xf32>
      %179 = arith.addf %176, %178 : vector<2x32xf32>
      %180 = math.tanh %179 : vector<2x32xf32>
      %c0_85 = arith.constant 0 : index
      %c0_86 = arith.constant 0 : index
      %181 = vector.load %arg21[%c0_85, %c0_86] : memref<32x384xbf16, #tpu.memory_space<vmem>>, vector<32x384xbf16>
      %182 = arith.truncf %180 : vector<2x32xf32> to vector<2x32xbf16>
      %cst_87 = arith.constant dense<0.000000e+00> : vector<2x384xf32>
      %183 = tpu.matmul %182, %181, %cst_87 {dimension_numbers = #tpu.dot_dimension_numbers<[1], [0], [0], [1], [0, 0, 1, 1], [], []>} : vector<2x32xbf16>, vector<32x384xbf16>, vector<2x384xf32> -> vector<2x384xf32>
      %c0_88 = arith.constant 0 : index
      %c0_89 = arith.constant 0 : index
      %184 = vector.load %arg22[%c0_88, %c0_89] : memref<1x384xf32, #tpu.memory_space<vmem>>, vector<1x384xf32>
      %185 = vector.broadcast %184 : vector<1x384xf32> to vector<2x384xf32>
      %186 = arith.addf %183, %185 : vector<2x384xf32>
      %cst_90 = arith.constant 0.000000e+00 : f32
      %187 = vector.broadcast %cst_90 : f32 to vector<2x384xf32>
      %188 = arith.maximumf %186, %187 : vector<2x384xf32>
      %c0_91 = arith.constant 0 : index
      %c0_92 = arith.constant 0 : index
      %189 = vector.load %arg23[%c0_91, %c0_92] : memref<384x128xbf16, #tpu.memory_space<vmem>>, vector<384x128xbf16>
      %190 = arith.truncf %188 : vector<2x384xf32> to vector<2x384xbf16>
      %cst_93 = arith.constant dense<0.000000e+00> : vector<2x128xf32>
      %191 = tpu.matmul %190, %189, %cst_93 {dimension_numbers = #tpu.dot_dimension_numbers<[1], [0], [0], [1], [0, 0, 1, 1], [], []>} : vector<2x384xbf16>, vector<384x128xbf16>, vector<2x128xf32> -> vector<2x128xf32>
      %c0_94 = arith.constant 0 : index
      %c0_95 = arith.constant 0 : index
      %192 = vector.load %arg24[%c0_94, %c0_95] : memref<1x128xf32, #tpu.memory_space<vmem>>, vector<1x128xf32>
      %193 = vector.broadcast %192 : vector<1x128xf32> to vector<2x128xf32>
      %194 = arith.addf %191, %193 : vector<2x128xf32>
      %c0_96 = arith.constant 0 : index
      %c0_97 = arith.constant 0 : index
      %195 = vector.load %arg25[%c0_96, %c0_97] : memref<2x128xf32, #tpu.memory_space<vmem>>, vector<2x128xf32>
      tpu.vector_store %arg25[%c0_96, %c0_97], %194 {strides = array<i32>} : memref<2x128xf32, #tpu.memory_space<vmem>>, vector<2x128xf32>,
    } else {
    }
    return
  }
  func.func @transform_0(%arg0: i32) -> (i32, i32) {
    %c0_i32 = arith.constant 0 : i32
    %c0_i32_0 = arith.constant 0 : i32
    %c0_i32_1 = arith.constant 0 : i32
    return %c0_i32, %c0_i32_0 : i32, i32
  }
  func.func @transform_1(%arg0: i32) -> (i32, i32) {
    %c0_i32 = arith.constant 0 : i32
    %c0_i32_0 = arith.constant 0 : i32
    %c0_i32_1 = arith.constant 0 : i32
    return %c0_i32, %c0_i32_0 : i32, i32
  }
  func.func @transform_2(%arg0: i32) -> (i32, i32) {
    %c0_i32 = arith.constant 0 : i32
    %c0_i32_0 = arith.constant 0 : i32
    %c0_i32_1 = arith.constant 0 : i32
    return %c0_i32, %c0_i32_0 : i32, i32
  }
  func.func @transform_3(%arg0: i32) -> (i32, i32) {
    %c0_i32 = arith.constant 0 : i32
    %c0_i32_0 = arith.constant 0 : i32
    %c0_i32_1 = arith.constant 0 : i32
    return %c0_i32, %c0_i32_0 : i32, i32
  }
  func.func @transform_4(%arg0: i32) -> (i32, i32) {
    %c0_i32 = arith.constant 0 : i32
    %c0_i32_0 = arith.constant 0 : i32
    %c0_i32_1 = arith.constant 0 : i32
    return %c0_i32, %c0_i32_0 : i32, i32
  }
  func.func @transform_5(%arg0: i32) -> (i32, i32) {
    %c0_i32 = arith.constant 0 : i32
    %c0_i32_0 = arith.constant 0 : i32
    %c0_i32_1 = arith.constant 0 : i32
    return %c0_i32, %c0_i32_0 : i32, i32
  }
  func.func @transform_6(%arg0: i32) -> (i32, i32, i32) {
    %c0_i32 = arith.constant 0 : i32
    %c0_i32_0 = arith.constant 0 : i32
    %c0_i32_1 = arith.constant 0 : i32
    return %arg0, %c0_i32, %c0_i32_0 : i32, i32, i32
  }
  func.func @transform_7(%arg0: i32) -> (i32, i32, i32) {
    %c0_i32 = arith.constant 0 : i32
    %c0_i32_0 = arith.constant 0 : i32
    %c0_i32_1 = arith.constant 0 : i32
    return %arg0, %c0_i32, %c0_i32_0 : i32, i32, i32
  }
  func.func @transform_8(%arg0: i32) -> (i32, i32, i32) {
    %c0_i32 = arith.constant 0 : i32
    %c0_i32_0 = arith.constant 0 : i32
    %c0_i32_1 = arith.constant 0 : i32
    return %arg0, %c0_i32, %c0_i32_0 : i32, i32, i32
  }
  func.func @transform_9(%arg0: i32) -> (i32, i32, i32) {
    %c0_i32 = arith.constant 0 : i32
    %c0_i32_0 = arith.constant 0 : i32
    %c0_i32_1 = arith.constant 0 : i32
    return %arg0, %c0_i32, %c0_i32_0 : i32, i32, i32
  }
  func.func @transform_10(%arg0: i32) -> (i32, i32, i32) {
    %c0_i32 = arith.constant 0 : i32
    %c0_i32_0 = arith.constant 0 : i32
    %c0_i32_1 = arith.constant 0 : i32
    return %arg0, %c0_i32, %c0_i32_0 : i32, i32, i32
  }
  func.func @transform_11(%arg0: i32) -> (i32, i32, i32) {
    %c0_i32 = arith.constant 0 : i32
    %c0_i32_0 = arith.constant 0 : i32
    %c0_i32_1 = arith.constant 0 : i32
    return %arg0, %c0_i32, %c0_i32_0 : i32, i32, i32
  }
  func.func @transform_12(%arg0: i32) -> (i32, i32, i32) {
    %c0_i32 = arith.constant 0 : i32
    %c0_i32_0 = arith.constant 0 : i32
    %c0_i32_1 = arith.constant 0 : i32
    return %arg0, %c0_i32, %c0_i32_0 : i32, i32, i32
  }
  func.func @transform_13(%arg0: i32) -> (i32, i32, i32) {
    %c0_i32 = arith.constant 0 : i32
    %c0_i32_0 = arith.constant 0 : i32
    %c0_i32_1 = arith.constant 0 : i32
    return %arg0, %c0_i32, %c0_i32_0 : i32, i32, i32
  }
  func.func @transform_14(%arg0: i32) -> (i32, i32, i32) {
    %c0_i32 = arith.constant 0 : i32
    %c0_i32_0 = arith.constant 0 : i32
    %c0_i32_1 = arith.constant 0 : i32
    return %arg0, %c0_i32, %c0_i32_0 : i32, i32, i32
  }
  func.func @transform_15(%arg0: i32) -> (i32, i32, i32) {
    %c0_i32 = arith.constant 0 : i32
    %c0_i32_0 = arith.constant 0 : i32
    %c0_i32_1 = arith.constant 0 : i32
    return %arg0, %c0_i32, %c0_i32_0 : i32, i32, i32
  }
  func.func @transform_16(%arg0: i32) -> (i32, i32, i32) {
    %c0_i32 = arith.constant 0 : i32
    %c0_i32_0 = arith.constant 0 : i32
    %c0_i32_1 = arith.constant 0 : i32
    return %arg0, %c0_i32, %c0_i32_0 : i32, i32, i32
  }
  func.func @transform_17(%arg0: i32) -> (i32, i32, i32) {
    %c0_i32 = arith.constant 0 : i32
    %c0_i32_0 = arith.constant 0 : i32
    %c0_i32_1 = arith.constant 0 : i32
    return %arg0, %c0_i32, %c0_i32_0 : i32, i32, i32
  }
  func.func @transform_18(%arg0: i32) -> (i32, i32) {
    %c0_i32 = arith.constant 0 : i32
    %c0_i32_0 = arith.constant 0 : i32
    %c0_i32_1 = arith.constant 0 : i32
    return %c0_i32, %c0_i32_0 : i32, i32
  }
  func.func @transform_19(%arg0: i32) -> (i32, i32) {
    %c0_i32 = arith.constant 0 : i32
    %c0_i32_0 = arith.constant 0 : i32
    %c0_i32_1 = arith.constant 0 : i32
    return %c0_i32, %c0_i32_0 : i32, i32
  }
  func.func @transform_20(%arg0: i32) -> (i32, i32) {
    %c0_i32 = arith.constant 0 : i32
    %c0_i32_0 = arith.constant 0 : i32
    %c0_i32_1 = arith.constant 0 : i32
    return %c0_i32, %c0_i32_0 : i32, i32
  }
  func.func @transform_21(%arg0: i32) -> (i32, i32) {
    %c0_i32 = arith.constant 0 : i32
    %c0_i32_0 = arith.constant 0 : i32
    %c0_i32_1 = arith.constant 0 : i32
    return %c0_i32, %c0_i32_0 : i32, i32
  }
  func.func @transform_22(%arg0: i32) -> (i32, i32) {
    %c0_i32 = arith.constant 0 : i32
    %c0_i32_0 = arith.constant 0 : i32
    %c0_i32_1 = arith.constant 0 : i32
    return %c0_i32, %c0_i32_0 : i32, i32
  }
  func.func @transform_23(%arg0: i32) -> (i32, i32) {
    %c0_i32 = arith.constant 0 : i32
    %c0_i32_0 = arith.constant 0 : i32
    %c0_i32_1 = arith.constant 0 : i32
    return %c0_i32, %c0_i32_0 : i32, i32
  }
  func.func @transform_24(%arg0: i32) -> (i32, i32) {
    %c0_i32 = arith.constant 0 : i32
    %c0_i32_0 = arith.constant 0 : i32
    %c0_i32_1 = arith.constant 0 : i32
    return %c0_i32, %c0_i32_0 : i32, i32
  }
}

</mosaic_0001>

<llo_original>
// kernel: _lambda_.1
$region0: #{_lambda_.1}
  #allocation0 [shape = 'u32[]', space=smem, size = 0x4, offset = 0x4, fixed_abs, tag = 'smem constant byte address 0x4 - core index']
  #allocation1 [shape = 'u32[72,128]{1,0:T(1,128)}', space=vmem, size = 0x9000, scoped, tag = 'internal scratch']
  #allocation2 [shape = 'f32[16,32]{1,0:T(8,128)}', space=vmem, size = 0x2000, scoped, tag = 'scratch operand']
  %s0 = inlined_call_operand.vmem [shape: f32[16,32], index: 0, kind: input, shape index: {}]
  %s1 = inlined_call_operand.vmem [shape: f32[2,8], index: 1, kind: input, shape index: {}]
  %s2 = inlined_call_operand.vmem [shape: f32[32,32], index: 2, kind: input, shape index: {}, may-alias: {2,3}]
  %s3 = inlined_call_operand.vmem [shape: f32[32,32], index: 3, kind: input, shape index: {}, may-alias: {2,3}]
  %s4 = inlined_call_operand.vmem [shape: f32[1,32], index: 4, kind: input, shape index: {}]
  %s5 = inlined_call_operand.vmem [shape: f32[1,32], index: 5, kind: input, shape index: {}]
  %s6 = inlined_call_operand.vmem [shape: bf16[2,32,96], index: 6, kind: input, shape index: {}]
  %s7 = inlined_call_operand.vmem [shape: f32[2,1,96], index: 7, kind: input, shape index: {}]
  %s8 = inlined_call_operand.vmem [shape: bf16[2,32,32], index: 8, kind: input, shape index: {}]
  %s9 = inlined_call_operand.vmem [shape: f32[2,1,32], index: 9, kind: input, shape index: {}]
  %s10 = inlined_call_operand.vmem [shape: f32[2,1,32], index: 10, kind: input, shape index: {}]
  %s11 = inlined_call_operand.vmem [shape: f32[2,1,32], index: 11, kind: input, shape index: {}]
  %s12 = inlined_call_operand.vmem [shape: bf16[2,32,64], index: 12, kind: input, shape index: {}]
  %s13 = inlined_call_operand.vmem [shape: f32[2,1,64], index: 13, kind: input, shape index: {}]
  %s14 = inlined_call_operand.vmem [shape: bf16[2,64,32], index: 14, kind: input, shape index: {}]
  %s15 = inlined_call_operand.vmem [shape: f32[2,1,32], index: 15, kind: input, shape index: {}]
  %s16 = inlined_call_operand.vmem [shape: f32[2,1,32], index: 16, kind: input, shape index: {}]
  %s17 = inlined_call_operand.vmem [shape: f32[2,1,32], index: 17, kind: input, shape index: {}]
  %s18 = inlined_call_operand.vmem [shape: bf16[32,32], index: 18, kind: input, shape index: {}]
  %s19 = inlined_call_operand.vmem [shape: f32[1,32], index: 19, kind: input, shape index: {}]
  %s20 = inlined_call_operand.vmem [shape: bf16[32,384], index: 20, kind: input, shape index: {}]
  %s21 = inlined_call_operand.vmem [shape: f32[1,384], index: 21, kind: input, shape index: {}]
  %s22 = inlined_call_operand.vmem [shape: bf16[384,128], index: 22, kind: input, shape index: {}]
  %s23 = inlined_call_operand.vmem [shape: f32[1,128], index: 23, kind: input, shape index: {}]
  %s24 = inlined_call_operand.hbm [shape: f32[2,128], index: 24, kind: output, shape index: {}]
  %s25 = sld [smem:[#allocation0]]
  $region137: #{_lambda_.1} parent=0
    _
  %s27 = ssub.s32 1, %s25
  %s28 = scalar_select 0, %s27, %s25
  $region1: #{_lambda_.1} parent=0
    #allocation3 [shape = 'u8[1024]{0}', space=vmem, size = 0x400, scoped, tag = 'output window, operand 0, single buffered']
    #allocation4 [shape = 's32[2]{0}', space=sflag, size = 0x8, scoped, tag = 'scoped memory for _lambda_.1']
    %29 = vsyncpa [#allocation4], 0
    loop: start=0, step=1, limit=4
    $region2: #{_lambda_.1} parent=1 // loop_pre_header
      _
    $region3: #{_lambda_.1} parent=1 // loop_header
      %s31 = sphi 0, %s35
      %p32 = scmp.ge.s32.totalorder %s31, 4
      %s39 = sphi 0, %s39
      %s41 = sphi 0, %s39
      %s42 = sphi 0, %s41
      %s56 = sphi 0, %s42
      %s60 = sphi 0, %s60
      %s62 = sphi 0, %s60
      %s63 = sphi 0, %s62
      %s77 = sphi 0, %s63
      %s81 = sphi 0, %s81
      %s83 = sphi 0, %s81
      %s84 = sphi 0, %s83
      %s98 = sphi 0, %s84
      %s102 = sphi 0, %s102
      %s104 = sphi 0, %s102
      %s105 = sphi 0, %s104
      %s119 = sphi 0, %s105
      %s123 = sphi 0, %s123
      %s125 = sphi 0, %s123
      %s126 = sphi 0, %s125
      %s140 = sphi 0, %s126
      %s144 = sphi 0, %s144
      %s146 = sphi 0, %s144
      %s147 = sphi 0, %s146
      %s161 = sphi 0, %s147
      %s167 = sphi 0, %s169
      %s170 = sphi 0, %s167
      %s171 = sphi 0, %s170
      %s187 = sphi 0, %s171
      %s193 = sphi 0, %s195
      %s196 = sphi 0, %s193
      %s197 = sphi 0, %s196
      %s213 = sphi 0, %s197
      %s219 = sphi 0, %s221
      %s222 = sphi 0, %s219
      %s223 = sphi 0, %s222
      %s239 = sphi 0, %s223
      %s245 = sphi 0, %s247
      %s248 = sphi 0, %s245
      %s249 = sphi 0, %s248
      %s265 = sphi 0, %s249
      %s271 = sphi 0, %s273
      %s274 = sphi 0, %s271
      %s275 = sphi 0, %s274
      %s291 = sphi 0, %s275
      %s297 = sphi 0, %s299
      %s300 = sphi 0, %s297
      %s301 = sphi 0, %s300
      %s317 = sphi 0, %s301
      %s323 = sphi 0, %s325
      %s326 = sphi 0, %s323
      %s327 = sphi 0, %s326
      %s343 = sphi 0, %s327
      %s349 = sphi 0, %s351
      %s352 = sphi 0, %s349
      %s353 = sphi 0, %s352
      %s369 = sphi 0, %s353
      %s375 = sphi 0, %s377
      %s378 = sphi 0, %s375
      %s379 = sphi 0, %s378
      %s395 = sphi 0, %s379
      %s401 = sphi 0, %s403
      %s404 = sphi 0, %s401
      %s405 = sphi 0, %s404
      %s421 = sphi 0, %s405
      %s427 = sphi 0, %s429
      %s430 = sphi 0, %s427
      %s431 = sphi 0, %s430
      %s447 = sphi 0, %s431
      %s453 = sphi 0, %s455
      %s456 = sphi 0, %s453
      %s457 = sphi 0, %s456
      %s473 = sphi 0, %s457
      %s477 = sphi 0, %s477
      %s479 = sphi 0, %s477
      %s480 = sphi 0, %s479
      %s494 = sphi 0, %s480
      %s498 = sphi 0, %s498
      %s500 = sphi 0, %s498
      %s501 = sphi 0, %s500
      %s515 = sphi 0, %s501
      %s519 = sphi 0, %s519
      %s521 = sphi 0, %s519
      %s522 = sphi 0, %s521
      %s536 = sphi 0, %s522
      %s540 = sphi 0, %s540
      %s542 = sphi 0, %s540
      %s543 = sphi 0, %s542
      %s557 = sphi 0, %s543
      %s561 = sphi 0, %s561
      %s563 = sphi 0, %s561
      %s564 = sphi 0, %s563
      %s578 = sphi 0, %s564
      %s582 = sphi 0, %s582
      %s584 = sphi 0, %s582
      %s585 = sphi 0, %s584
      %s599 = sphi 0, %s585
      %s603 = sphi 0, %s603
      %s605 = sphi 0, %s603
      %s606 = sphi 0, %s605
      %s620 = sphi 0, %s606
    $region4: #{_lambda_.1} parent=1 // loop_header_branch
      %34 = sbr.rel (%p32) target = $region8
    $region5: #{_lambda_.1} parent=1 // loop_body
      %s36 = ssub.s32 %s31, 1
      %s37 = ssub.s32 %s31, 2
      %s38 = sadd.s32 %s31, 1
      %s40 = sadd.s32 %s39, 1
      %p43 = scmp.eq.s32.totalorder %s31, 1
      %p44 = scmp.ne.s32.totalorder %s39, %s41
      %p45 = scmp.eq.s32.totalorder %s31, 0
      %p46 = por %p44, %p45
      %p47 = scmp.ne.s32.totalorder %s39, %s41
      %p48 = scmp.eq.s32.totalorder %s36, 1
      %p49 = por %p47, %p48
      %p50 = scmp.ne.s32.totalorder %s41, %s42
      %p51 = scmp.eq.s32.totalorder %s36, 0
      %p52 = por %p50, %p51
      %p53 = scmp.ne.s32.totalorder %s41, %s42
      %p54 = scmp.eq.s32.totalorder %s37, 1
      %p55 = por %p53, %p54
      %p57 = scmp.ne.s32.totalorder %s42, %s56
      %p58 = scmp.eq.s32.totalorder %s37, 0
      %p59 = por %p57, %p58
      %s61 = sadd.s32 %s60, 1
      %p64 = scmp.eq.s32.totalorder %s31, 1
      %p65 = scmp.ne.s32.totalorder %s60, %s62
      %p66 = scmp.eq.s32.totalorder %s31, 0
      %p67 = por %p65, %p66
      %p68 = scmp.ne.s32.totalorder %s60, %s62
      %p69 = scmp.eq.s32.totalorder %s36, 1
      %p70 = por %p68, %p69
      %p71 = scmp.ne.s32.totalorder %s62, %s63
      %p72 = scmp.eq.s32.totalorder %s36, 0
      %p73 = por %p71, %p72
      %p74 = scmp.ne.s32.totalorder %s62, %s63
      %p75 = scmp.eq.s32.totalorder %s37, 1
      %p76 = por %p74, %p75
      %p78 = scmp.ne.s32.totalorder %s63, %s77
      %p79 = scmp.eq.s32.totalorder %s37, 0
      %p80 = por %p78, %p79
      %s82 = sadd.s32 %s81, 1
      %p85 = scmp.eq.s32.totalorder %s31, 1
      %p86 = scmp.ne.s32.totalorder %s81, %s83
      %p87 = scmp.eq.s32.totalorder %s31, 0
      %p88 = por %p86, %p87
      %p89 = scmp.ne.s32.totalorder %s81, %s83
      %p90 = scmp.eq.s32.totalorder %s36, 1
      %p91 = por %p89, %p90
      %p92 = scmp.ne.s32.totalorder %s83, %s84
      %p93 = scmp.eq.s32.totalorder %s36, 0
      %p94 = por %p92, %p93
      %p95 = scmp.ne.s32.totalorder %s83, %s84
      %p96 = scmp.eq.s32.totalorder %s37, 1
      %p97 = por %p95, %p96
      %p99 = scmp.ne.s32.totalorder %s84, %s98
      %p100 = scmp.eq.s32.totalorder %s37, 0
      %p101 = por %p99, %p100
      %s103 = sadd.s32 %s102, 1
      %p106 = scmp.eq.s32.totalorder %s31, 1
      %p107 = scmp.ne.s32.totalorder %s102, %s104
      %p108 = scmp.eq.s32.totalorder %s31, 0
      %p109 = por %p107, %p108
      %p110 = scmp.ne.s32.totalorder %s102, %s104
      %p111 = scmp.eq.s32.totalorder %s36, 1
      %p112 = por %p110, %p111
      %p113 = scmp.ne.s32.totalorder %s104, %s105
      %p114 = scmp.eq.s32.totalorder %s36, 0
      %p115 = por %p113, %p114
      %p116 = scmp.ne.s32.totalorder %s104, %s105
      %p117 = scmp.eq.s32.totalorder %s37, 1
      %p118 = por %p116, %p117
      %p120 = scmp.ne.s32.totalorder %s105, %s119
      %p121 = scmp.eq.s32.totalorder %s37, 0
      %p122 = por %p120, %p121
      %s124 = sadd.s32 %s123, 1
      %p127 = scmp.eq.s32.totalorder %s31, 1
      %p128 = scmp.ne.s32.totalorder %s123, %s125
      %p129 = scmp.eq.s32.totalorder %s31, 0
      %p130 = por %p128, %p129
      %p131 = scmp.ne.s32.totalorder %s123, %s125
      %p132 = scmp.eq.s32.totalorder %s36, 1
      %p133 = por %p131, %p132
      %p134 = scmp.ne.s32.totalorder %s125, %s126
      %p135 = scmp.eq.s32.totalorder %s36, 0
      %p136 = por %p134, %p135
      %p137 = scmp.ne.s32.totalorder %s125, %s126
      %p138 = scmp.eq.s32.totalorder %s37, 1
      %p139 = por %p137, %p138
      %p141 = scmp.ne.s32.totalorder %s126, %s140
      %p142 = scmp.eq.s32.totalorder %s37, 0
      %p143 = por %p141, %p142
      %s145 = sadd.s32 %s144, 1
      %p148 = scmp.eq.s32.totalorder %s31, 1
      %p149 = scmp.ne.s32.totalorder %s144, %s146
      %p150 = scmp.eq.s32.totalorder %s31, 0
      %p151 = por %p149, %p150
      %p152 = scmp.ne.s32.totalorder %s144, %s146
      %p153 = scmp.eq.s32.totalorder %s36, 1
      %p154 = por %p152, %p153
      %p155 = scmp.ne.s32.totalorder %s146, %s147
      %p156 = scmp.eq.s32.totalorder %s36, 0
      %p157 = por %p155, %p156
      %p158 = scmp.ne.s32.totalorder %s146, %s147
      %p159 = scmp.eq.s32.totalorder %s37, 1
      %p160 = por %p158, %p159
      %p162 = scmp.ne.s32.totalorder %s147, %s161
      %p163 = scmp.eq.s32.totalorder %s37, 0
      %p164 = por %p162, %p163
      %s165 = ssub.s32 %s31, %s38
      %p166 = scmp.eq.s32.totalorder %s165, 0
      %s168 = sadd.s32 %s167, 1
      %s169 = scalar_select %p166, %s167, %s168
      %p172 = pneg %p166
      %p173 = scmp.eq.s32.totalorder %s31, 1
      %p174 = por %p172, %p173
      %p175 = scmp.ne.s32.totalorder %s167, %s170
      %p176 = scmp.eq.s32.totalorder %s31, 0
      %p177 = por %p175, %p176
      %p178 = scmp.ne.s32.totalorder %s167, %s170
      %p179 = scmp.eq.s32.totalorder %s36, 1
      %p180 = por %p178, %p179
      %p181 = scmp.ne.s32.totalorder %s170, %s171
      %p182 = scmp.eq.s32.totalorder %s36, 0
      %p183 = por %p181, %p182
      %p184 = scmp.ne.s32.totalorder %s170, %s171
      %p185 = scmp.eq.s32.totalorder %s37, 1
      %p186 = por %p184, %p185
      %p188 = scmp.ne.s32.totalorder %s171, %s187
      %p189 = scmp.eq.s32.totalorder %s37, 0
      %p190 = por %p188, %p189
      %s191 = ssub.s32 %s31, %s38
      %p192 = scmp.eq.s32.totalorder %s191, 0
      %s194 = sadd.s32 %s193, 1
      %s195 = scalar_select %p192, %s193, %s194
      %p198 = pneg %p192
      %p199 = scmp.eq.s32.totalorder %s31, 1
      %p200 = por %p198, %p199
      %p201 = scmp.ne.s32.totalorder %s193, %s196
      %p202 = scmp.eq.s32.totalorder %s31, 0
      %p203 = por %p201, %p202
      %p204 = scmp.ne.s32.totalorder %s193, %s196
      %p205 = scmp.eq.s32.totalorder %s36, 1
      %p206 = por %p204, %p205
      %p207 = scmp.ne.s32.totalorder %s196, %s197
      %p208 = scmp.eq.s32.totalorder %s36, 0
      %p209 = por %p207, %p208
      %p210 = scmp.ne.s32.totalorder %s196, %s197
      %p211 = scmp.eq.s32.totalorder %s37, 1
      %p212 = por %p210, %p211
      %p214 = scmp.ne.s32.totalorder %s197, %s213
      %p215 = scmp.eq.s32.totalorder %s37, 0
      %p216 = por %p214, %p215
      %s217 = ssub.s32 %s31, %s38
      %p218 = scmp.eq.s32.totalorder %s217, 0
      %s220 = sadd.s32 %s219, 1
      %s221 = scalar_select %p218, %s219, %s220
      %p224 = pneg %p218
      %p225 = scmp.eq.s32.totalorder %s31, 1
      %p226 = por %p224, %p225
      %p227 = scmp.ne.s32.totalorder %s219, %s222
      %p228 = scmp.eq.s32.totalorder %s31, 0
      %p229 = por %p227, %p228
      %p230 = scmp.ne.s32.totalorder %s219, %s222
      %p231 = scmp.eq.s32.totalorder %s36, 1
      %p232 = por %p230, %p231
      %p233 = scmp.ne.s32.totalorder %s222, %s223
      %p234 = scmp.eq.s32.totalorder %s36, 0
      %p235 = por %p233, %p234
      %p236 = scmp.ne.s32.totalorder %s222, %s223
      %p237 = scmp.eq.s32.totalorder %s37, 1
      %p238 = por %p236, %p237
      %p240 = scmp.ne.s32.totalorder %s223, %s239
      %p241 = scmp.eq.s32.totalorder %s37, 0
      %p242 = por %p240, %p241
      %s243 = ssub.s32 %s31, %s38
      %p244 = scmp.eq.s32.totalorder %s243, 0
      %s246 = sadd.s32 %s245, 1
      %s247 = scalar_select %p244, %s245, %s246
      %p250 = pneg %p244
      %p251 = scmp.eq.s32.totalorder %s31, 1
      %p252 = por %p250, %p251
      %p253 = scmp.ne.s32.totalorder %s245, %s248
      %p254 = scmp.eq.s32.totalorder %s31, 0
      %p255 = por %p253, %p254
      %p256 = scmp.ne.s32.totalorder %s245, %s248
      %p257 = scmp.eq.s32.totalorder %s36, 1
      %p258 = por %p256, %p257
      %p259 = scmp.ne.s32.totalorder %s248, %s249
      %p260 = scmp.eq.s32.totalorder %s36, 0
      %p261 = por %p259, %p260
      %p262 = scmp.ne.s32.totalorder %s248, %s249
      %p263 = scmp.eq.s32.totalorder %s37, 1
      %p264 = por %p262, %p263
      %p266 = scmp.ne.s32.totalorder %s249, %s265
      %p267 = scmp.eq.s32.totalorder %s37, 0
      %p268 = por %p266, %p267
      %s269 = ssub.s32 %s31, %s38
      %p270 = scmp.eq.s32.totalorder %s269, 0
      %s272 = sadd.s32 %s271, 1
      %s273 = scalar_select %p270, %s271, %s272
      %p276 = pneg %p270
      %p277 = scmp.eq.s32.totalorder %s31, 1
      %p278 = por %p276, %p277
      %p279 = scmp.ne.s32.totalorder %s271, %s274
      %p280 = scmp.eq.s32.totalorder %s31, 0
      %p281 = por %p279, %p280
      %p282 = scmp.ne.s32.totalorder %s271, %s274
      %p283 = scmp.eq.s32.totalorder %s36, 1
      %p284 = por %p282, %p283
      %p285 = scmp.ne.s32.totalorder %s274, %s275
      %p286 = scmp.eq.s32.totalorder %s36, 0
      %p287 = por %p285, %p286
      %p288 = scmp.ne.s32.totalorder %s274, %s275
      %p289 = scmp.eq.s32.totalorder %s37, 1
      %p290 = por %p288, %p289
      %p292 = scmp.ne.s32.totalorder %s275, %s291
      %p293 = scmp.eq.s32.totalorder %s37, 0
      %p294 = por %p292, %p293
      %s295 = ssub.s32 %s31, %s38
      %p296 = scmp.eq.s32.totalorder %s295, 0
      %s298 = sadd.s32 %s297, 1
      %s299 = scalar_select %p296, %s297, %s298
      %p302 = pneg %p296
      %p303 = scmp.eq.s32.totalorder %s31, 1
      %p304 = por %p302, %p303
      %p305 = scmp.ne.s32.totalorder %s297, %s300
      %p306 = scmp.eq.s32.totalorder %s31, 0
      %p307 = por %p305, %p306
      %p308 = scmp.ne.s32.totalorder %s297, %s300
      %p309 = scmp.eq.s32.totalorder %s36, 1
      %p310 = por %p308, %p309
      %p311 = scmp.ne.s32.totalorder %s300, %s301
      %p312 = scmp.eq.s32.totalorder %s36, 0
      %p313 = por %p311, %p312
      %p314 = scmp.ne.s32.totalorder %s300, %s301
      %p315 = scmp.eq.s32.totalorder %s37, 1
      %p316 = por %p314, %p315
      %p318 = scmp.ne.s32.totalorder %s301, %s317
      %p319 = scmp.eq.s32.totalorder %s37, 0
      %p320 = por %p318, %p319
      %s321 = ssub.s32 %s31, %s38
      %p322 = scmp.eq.s32.totalorder %s321, 0
      %s324 = sadd.s32 %s323, 1
      %s325 = scalar_select %p322, %s323, %s324
      %p328 = pneg %p322
      %p329 = scmp.eq.s32.totalorder %s31, 1
      %p330 = por %p328, %p329
      %p331 = scmp.ne.s32.totalorder %s323, %s326
      %p332 = scmp.eq.s32.totalorder %s31, 0
      %p333 = por %p331, %p332
      %p334 = scmp.ne.s32.totalorder %s323, %s326
      %p335 = scmp.eq.s32.totalorder %s36, 1
      %p336 = por %p334, %p335
      %p337 = scmp.ne.s32.totalorder %s326, %s327
      %p338 = scmp.eq.s32.totalorder %s36, 0
      %p339 = por %p337, %p338
      %p340 = scmp.ne.s32.totalorder %s326, %s327
      %p341 = scmp.eq.s32.totalorder %s37, 1
      %p342 = por %p340, %p341
      %p344 = scmp.ne.s32.totalorder %s327, %s343
      %p345 = scmp.eq.s32.totalorder %s37, 0
      %p346 = por %p344, %p345
      %s347 = ssub.s32 %s31, %s38
      %p348 = scmp.eq.s32.totalorder %s347, 0
      %s350 = sadd.s32 %s349, 1
      %s351 = scalar_select %p348, %s349, %s350
      %p354 = pneg %p348
      %p355 = scmp.eq.s32.totalorder %s31, 1
      %p356 = por %p354, %p355
      %p357 = scmp.ne.s32.totalorder %s349, %s352
      %p358 = scmp.eq.s32.totalorder %s31, 0
      %p359 = por %p357, %p358
      %p360 = scmp.ne.s32.totalorder %s349, %s352
      %p361 = scmp.eq.s32.totalorder %s36, 1
      %p362 = por %p360, %p361
      %p363 = scmp.ne.s32.totalorder %s352, %s353
      %p364 = scmp.eq.s32.totalorder %s36, 0
      %p365 = por %p363, %p364
      %p366 = scmp.ne.s32.totalorder %s352, %s353
      %p367 = scmp.eq.s32.totalorder %s37, 1
      %p368 = por %p366, %p367
      %p370 = scmp.ne.s32.totalorder %s353, %s369
      %p371 = scmp.eq.s32.totalorder %s37, 0
      %p372 = por %p370, %p371
      %s373 = ssub.s32 %s31, %s38
      %p374 = scmp.eq.s32.totalorder %s373, 0
      %s376 = sadd.s32 %s375, 1
      %s377 = scalar_select %p374, %s375, %s376
      %p380 = pneg %p374
      %p381 = scmp.eq.s32.totalorder %s31, 1
      %p382 = por %p380, %p381
      %p383 = scmp.ne.s32.totalorder %s375, %s378
      %p384 = scmp.eq.s32.totalorder %s31, 0
      %p385 = por %p383, %p384
      %p386 = scmp.ne.s32.totalorder %s375, %s378
      %p387 = scmp.eq.s32.totalorder %s36, 1
      %p388 = por %p386, %p387
      %p389 = scmp.ne.s32.totalorder %s378, %s379
      %p390 = scmp.eq.s32.totalorder %s36, 0
      %p391 = por %p389, %p390
      %p392 = scmp.ne.s32.totalorder %s378, %s379
      %p393 = scmp.eq.s32.totalorder %s37, 1
      %p394 = por %p392, %p393
      %p396 = scmp.ne.s32.totalorder %s379, %s395
      %p397 = scmp.eq.s32.totalorder %s37, 0
      %p398 = por %p396, %p397
      %s399 = ssub.s32 %s31, %s38
      %p400 = scmp.eq.s32.totalorder %s399, 0
      %s402 = sadd.s32 %s401, 1
      %s403 = scalar_select %p400, %s401, %s402
      %p406 = pneg %p400
      %p407 = scmp.eq.s32.totalorder %s31, 1
      %p408 = por %p406, %p407
      %p409 = scmp.ne.s32.totalorder %s401, %s404
      %p410 = scmp.eq.s32.totalorder %s31, 0
      %p411 = por %p409, %p410
      %p412 = scmp.ne.s32.totalorder %s401, %s404
      %p413 = scmp.eq.s32.totalorder %s36, 1
      %p414 = por %p412, %p413
      %p415 = scmp.ne.s32.totalorder %s404, %s405
      %p416 = scmp.eq.s32.totalorder %s36, 0
      %p417 = por %p415, %p416
      %p418 = scmp.ne.s32.totalorder %s404, %s405
      %p419 = scmp.eq.s32.totalorder %s37, 1
      %p420 = por %p418, %p419
      %p422 = scmp.ne.s32.totalorder %s405, %s421
      %p423 = scmp.eq.s32.totalorder %s37, 0
      %p424 = por %p422, %p423
      %s425 = ssub.s32 %s31, %s38
      %p426 = scmp.eq.s32.totalorder %s425, 0
      %s428 = sadd.s32 %s427, 1
      %s429 = scalar_select %p426, %s427, %s428
      %p432 = pneg %p426
      %p433 = scmp.eq.s32.totalorder %s31, 1
      %p434 = por %p432, %p433
      %p435 = scmp.ne.s32.totalorder %s427, %s430
      %p436 = scmp.eq.s32.totalorder %s31, 0
      %p437 = por %p435, %p436
      %p438 = scmp.ne.s32.totalorder %s427, %s430
      %p439 = scmp.eq.s32.totalorder %s36, 1
      %p440 = por %p438, %p439
      %p441 = scmp.ne.s32.totalorder %s430, %s431
      %p442 = scmp.eq.s32.totalorder %s36, 0
      %p443 = por %p441, %p442
      %p444 = scmp.ne.s32.totalorder %s430, %s431
      %p445 = scmp.eq.s32.totalorder %s37, 1
      %p446 = por %p444, %p445
      %p448 = scmp.ne.s32.totalorder %s431, %s447
      %p449 = scmp.eq.s32.totalorder %s37, 0
      %p450 = por %p448, %p449
      %s451 = ssub.s32 %s31, %s38
      %p452 = scmp.eq.s32.totalorder %s451, 0
      %s454 = sadd.s32 %s453, 1
      %s455 = scalar_select %p452, %s453, %s454
      %p458 = pneg %p452
      %p459 = scmp.eq.s32.totalorder %s31, 1
      %p460 = por %p458, %p459
      %p461 = scmp.ne.s32.totalorder %s453, %s456
      %p462 = scmp.eq.s32.totalorder %s31, 0
      %p463 = por %p461, %p462
      %p464 = scmp.ne.s32.totalorder %s453, %s456
      %p465 = scmp.eq.s32.totalorder %s36, 1
      %p466 = por %p464, %p465
      %p467 = scmp.ne.s32.totalorder %s456, %s457
      %p468 = scmp.eq.s32.totalorder %s36, 0
      %p469 = por %p467, %p468
      %p470 = scmp.ne.s32.totalorder %s456, %s457
      %p471 = scmp.eq.s32.totalorder %s37, 1
      %p472 = por %p470, %p471
      %p474 = scmp.ne.s32.totalorder %s457, %s473
      %p475 = scmp.eq.s32.totalorder %s37, 0
      %p476 = por %p474, %p475
      %s478 = sadd.s32 %s477, 1
      %p481 = scmp.eq.s32.totalorder %s31, 1
      %p482 = scmp.ne.s32.totalorder %s477, %s479
      %p483 = scmp.eq.s32.totalorder %s31, 0
      %p484 = por %p482, %p483
      %p485 = scmp.ne.s32.totalorder %s477, %s479
      %p486 = scmp.eq.s32.totalorder %s36, 1
      %p487 = por %p485, %p486
      %p488 = scmp.ne.s32.totalorder %s479, %s480
      %p489 = scmp.eq.s32.totalorder %s36, 0
      %p490 = por %p488, %p489
      %p491 = scmp.ne.s32.totalorder %s479, %s480
      %p492 = scmp.eq.s32.totalorder %s37, 1
      %p493 = por %p491, %p492
      %p495 = scmp.ne.s32.totalorder %s480, %s494
      %p496 = scmp.eq.s32.totalorder %s37, 0
      %p497 = por %p495, %p496
      %s499 = sadd.s32 %s498, 1
      %p502 = scmp.eq.s32.totalorder %s31, 1
      %p503 = scmp.ne.s32.totalorder %s498, %s500
      %p504 = scmp.eq.s32.totalorder %s31, 0
      %p505 = por %p503, %p504
      %p506 = scmp.ne.s32.totalorder %s498, %s500
      %p507 = scmp.eq.s32.totalorder %s36, 1
      %p508 = por %p506, %p507
      %p509 = scmp.ne.s32.totalorder %s500, %s501
      %p510 = scmp.eq.s32.totalorder %s36, 0
      %p511 = por %p509, %p510
      %p512 = scmp.ne.s32.totalorder %s500, %s501
      %p513 = scmp.eq.s32.totalorder %s37, 1
      %p514 = por %p512, %p513
      %p516 = scmp.ne.s32.totalorder %s501, %s515
      %p517 = scmp.eq.s32.totalorder %s37, 0
      %p518 = por %p516, %p517
      %s520 = sadd.s32 %s519, 1
      %p523 = scmp.eq.s32.totalorder %s31, 1
      %p524 = scmp.ne.s32.totalorder %s519, %s521
      %p525 = scmp.eq.s32.totalorder %s31, 0
      %p526 = por %p524, %p525
      %p527 = scmp.ne.s32.totalorder %s519, %s521
      %p528 = scmp.eq.s32.totalorder %s36, 1
      %p529 = por %p527, %p528
      %p530 = scmp.ne.s32.totalorder %s521, %s522
      %p531 = scmp.eq.s32.totalorder %s36, 0
      %p532 = por %p530, %p531
      %p533 = scmp.ne.s32.totalorder %s521, %s522
      %p534 = scmp.eq.s32.totalorder %s37, 1
      %p535 = por %p533, %p534
      %p537 = scmp.ne.s32.totalorder %s522, %s536
      %p538 = scmp.eq.s32.totalorder %s37, 0
      %p539 = por %p537, %p538
      %s541 = sadd.s32 %s540, 1
      %p544 = scmp.eq.s32.totalorder %s31, 1
      %p545 = scmp.ne.s32.totalorder %s540, %s542
      %p546 = scmp.eq.s32.totalorder %s31, 0
      %p547 = por %p545, %p546
      %p548 = scmp.ne.s32.totalorder %s540, %s542
      %p549 = scmp.eq.s32.totalorder %s36, 1
      %p550 = por %p548, %p549
      %p551 = scmp.ne.s32.totalorder %s542, %s543
      %p552 = scmp.eq.s32.totalorder %s36, 0
      %p553 = por %p551, %p552
      %p554 = scmp.ne.s32.totalorder %s542, %s543
      %p555 = scmp.eq.s32.totalorder %s37, 1
      %p556 = por %p554, %p555
      %p558 = scmp.ne.s32.totalorder %s543, %s557
      %p559 = scmp.eq.s32.totalorder %s37, 0
      %p560 = por %p558, %p559
      %s562 = sadd.s32 %s561, 1
      %p565 = scmp.eq.s32.totalorder %s31, 1
      %p566 = scmp.ne.s32.totalorder %s561, %s563
      %p567 = scmp.eq.s32.totalorder %s31, 0
      %p568 = por %p566, %p567
      %p569 = scmp.ne.s32.totalorder %s561, %s563
      %p570 = scmp.eq.s32.totalorder %s36, 1
      %p571 = por %p569, %p570
      %p572 = scmp.ne.s32.totalorder %s563, %s564
      %p573 = scmp.eq.s32.totalorder %s36, 0
      %p574 = por %p572, %p573
      %p575 = scmp.ne.s32.totalorder %s563, %s564
      %p576 = scmp.eq.s32.totalorder %s37, 1
      %p577 = por %p575, %p576
      %p579 = scmp.ne.s32.totalorder %s564, %s578
      %p580 = scmp.eq.s32.totalorder %s37, 0
      %p581 = por %p579, %p580
      %s583 = sadd.s32 %s582, 1
      %p586 = scmp.eq.s32.totalorder %s31, 1
      %p587 = scmp.ne.s32.totalorder %s582, %s584
      %p588 = scmp.eq.s32.totalorder %s31, 0
      %p589 = por %p587, %p588
      %p590 = scmp.ne.s32.totalorder %s582, %s584
      %p591 = scmp.eq.s32.totalorder %s36, 1
      %p592 = por %p590, %p591
      %p593 = scmp.ne.s32.totalorder %s584, %s585
      %p594 = scmp.eq.s32.totalorder %s36, 0
      %p595 = por %p593, %p594
      %p596 = scmp.ne.s32.totalorder %s584, %s585
      %p597 = scmp.eq.s32.totalorder %s37, 1
      %p598 = por %p596, %p597
      %p600 = scmp.ne.s32.totalorder %s585, %s599
      %p601 = scmp.eq.s32.totalorder %s37, 0
      %p602 = por %p600, %p601
      %s604 = sadd.s32 %s603, 1
      %p607 = scmp.eq.s32.totalorder %s31, 1
      %p608 = scmp.ne.s32.totalorder %s603, %s605
      %p609 = scmp.eq.s32.totalorder %s31, 0
      %p610 = por %p608, %p609
      %p611 = scmp.ne.s32.totalorder %s603, %s605
      %p612 = scmp.eq.s32.totalorder %s36, 1
      %p613 = por %p611, %p612
      %p614 = scmp.ne.s32.totalorder %s605, %s606
      %p615 = scmp.eq.s32.totalorder %s36, 0
      %p616 = por %p614, %p615
      %p617 = scmp.ne.s32.totalorder %s605, %s606
      %p618 = scmp.eq.s32.totalorder %s37, 1
      %p619 = por %p617, %p618
      %p621 = scmp.ne.s32.totalorder %s606, %s620
      %p622 = scmp.eq.s32.totalorder %s37, 0
      %p623 = por %p621, %p622
      %p624 = scmp.le.s32.totalorder 1, %s31
      %p625 = scmp.lt.s32.totalorder %s31, 3
      %p626 = pnand %p624, %p625
      %p627 = pneg %p626
      // Predicated region
      $region9: #{_lambda_.1} parent=5 // pred_check
        _
      $region10: #{_lambda_.1} parent=5 // pred_check_branch
        %629 = sbr.rel (%p626) target = $region12
      $region11: #{_lambda_.1} parent=5 // pred_region
        %s630 = ssub.s32 %s31, 1
        // Predicated region
        $region13: #{_lambda_.1} parent=11 // pred_check
          %p631 = pneg %p52
        $region14: #{_lambda_.1} parent=11 // pred_check_branch
          %633 = sbr.rel (%p631) target = $region16
        $region15: #{_lambda_.1} parent=11 // pred_region
          _
        $region16: #{_lambda_.1} parent=11 // pred_fallthru
          _
        // Predicated region
        $region17: #{_lambda_.1} parent=11 // pred_check
          %p634 = pneg %p73
        $region18: #{_lambda_.1} parent=11 // pred_check_branch
          %636 = sbr.rel (%p634) target = $region20
        $region19: #{_lambda_.1} parent=11 // pred_region
          _
        $region20: #{_lambda_.1} parent=11 // pred_fallthru
          _
        // Predicated region
        $region21: #{_lambda_.1} parent=11 // pred_check
          %p637 = pneg %p94
        $region22: #{_lambda_.1} parent=11 // pred_check_branch
          %639 = sbr.rel (%p637) target = $region24
        $region23: #{_lambda_.1} parent=11 // pred_region
          _
        $region24: #{_lambda_.1} parent=11 // pred_fallthru
          _
        // Predicated region
        $region25: #{_lambda_.1} parent=11 // pred_check
          %p640 = pneg %p115
        $region26: #{_lambda_.1} parent=11 // pred_check_branch
          %642 = sbr.rel (%p640) target = $region28
        $region27: #{_lambda_.1} parent=11 // pred_region
          _
        $region28: #{_lambda_.1} parent=11 // pred_fallthru
          _
        // Predicated region
        $region29: #{_lambda_.1} parent=11 // pred_check
          %p643 = pneg %p136
        $region30: #{_lambda_.1} parent=11 // pred_check_branch
          %645 = sbr.rel (%p643) target = $region32
        $region31: #{_lambda_.1} parent=11 // pred_region
          _
        $region32: #{_lambda_.1} parent=11 // pred_fallthru
          _
        // Predicated region
        $region33: #{_lambda_.1} parent=11 // pred_check
          %p646 = pneg %p157
        $region34: #{_lambda_.1} parent=11 // pred_check_branch
          %648 = sbr.rel (%p646) target = $region36
        $region35: #{_lambda_.1} parent=11 // pred_region
          _
        $region36: #{_lambda_.1} parent=11 // pred_fallthru
          _
        // Predicated region
        $region37: #{_lambda_.1} parent=11 // pred_check
          %p649 = pneg %p490
        $region38: #{_lambda_.1} parent=11 // pred_check_branch
          %651 = sbr.rel (%p649) target = $region40
        $region39: #{_lambda_.1} parent=11 // pred_region
          _
        $region40: #{_lambda_.1} parent=11 // pred_fallthru
          _
        // Predicated region
        $region41: #{_lambda_.1} parent=11 // pred_check
          %p652 = pneg %p511
        $region42: #{_lambda_.1} parent=11 // pred_check_branch
          %654 = sbr.rel (%p652) target = $region44
        $region43: #{_lambda_.1} parent=11 // pred_region
          _
        $region44: #{_lambda_.1} parent=11 // pred_fallthru
          _
        // Predicated region
        $region45: #{_lambda_.1} parent=11 // pred_check
          %p655 = pneg %p532
        $region46: #{_lambda_.1} parent=11 // pred_check_branch
          %657 = sbr.rel (%p655) target = $region48
        $region47: #{_lambda_.1} parent=11 // pred_region
          _
        $region48: #{_lambda_.1} parent=11 // pred_fallthru
          _
        // Predicated region
        $region49: #{_lambda_.1} parent=11 // pred_check
          %p658 = pneg %p553
        $region50: #{_lambda_.1} parent=11 // pred_check_branch
          %660 = sbr.rel (%p658) target = $region52
        $region51: #{_lambda_.1} parent=11 // pred_region
          _
        $region52: #{_lambda_.1} parent=11 // pred_fallthru
          _
        // Predicated region
        $region53: #{_lambda_.1} parent=11 // pred_check
          %p661 = pneg %p574
        $region54: #{_lambda_.1} parent=11 // pred_check_branch
          %663 = sbr.rel (%p661) target = $region56
        $region55: #{_lambda_.1} parent=11 // pred_region
          _
        $region56: #{_lambda_.1} parent=11 // pred_fallthru
          _
        // Predicated region
        $region57: #{_lambda_.1} parent=11 // pred_check
          %p664 = pneg %p595
        $region58: #{_lambda_.1} parent=11 // pred_check_branch
          %666 = sbr.rel (%p664) target = $region60
        $region59: #{_lambda_.1} parent=11 // pred_region
          _
        $region60: #{_lambda_.1} parent=11 // pred_fallthru
          _
      $region12: #{_lambda_.1} parent=5 // pred_fallthru
        _
      %p667 = scmp.lt.s32.totalorder %s31, 2
      // Predicated region
      $region61: #{_lambda_.1} parent=5 // pred_check
        %p668 = pneg %p667
      $region62: #{_lambda_.1} parent=5 // pred_check_branch
        %670 = sbr.rel (%p668) target = $region64
      $region63: #{_lambda_.1} parent=5 // pred_region
        // Predicated region
        $region65: #{_lambda_.1} parent=63 // pred_check
          %p671 = pneg %p177
        $region66: #{_lambda_.1} parent=63 // pred_check_branch
          %673 = sbr.rel (%p671) target = $region68
        $region67: #{_lambda_.1} parent=63 // pred_region
          %p674 = scmp.lt.s32.totalorder %s31, 1
          %s675 = scalar_select %p674, %s31, 1
          %s676 = smul.addr %s675, 4
          %s677 = smul.addr %s676, 4
          %s678 = scalar_lea.vmem %s6, %s677
        $region68: #{_lambda_.1} parent=63 // pred_fallthru
          _
        // Predicated region
        $region69: #{_lambda_.1} parent=63 // pred_check
          %p679 = pneg %p203
        $region70: #{_lambda_.1} parent=63 // pred_check_branch
          %681 = sbr.rel (%p679) target = $region72
        $region71: #{_lambda_.1} parent=63 // pred_region
          %p682 = scmp.lt.s32.totalorder %s31, 1
          %s683 = scalar_select %p682, %s31, 1
          %s684 = scalar_lea.vmem %s7, %s683
        $region72: #{_lambda_.1} parent=63 // pred_fallthru
          _
        // Predicated region
        $region73: #{_lambda_.1} parent=63 // pred_check
          %p685 = pneg %p229
        $region74: #{_lambda_.1} parent=63 // pred_check_branch
          %687 = sbr.rel (%p685) target = $region76
        $region75: #{_lambda_.1} parent=63 // pred_region
          %p688 = scmp.lt.s32.totalorder %s31, 1
          %s689 = scalar_select %p688, %s31, 1
          %s690 = smul.addr %s689, 4
          %s691 = smul.addr %s690, 4
          %s692 = scalar_lea.vmem %s8, %s691
        $region76: #{_lambda_.1} parent=63 // pred_fallthru
          _
        // Predicated region
        $region77: #{_lambda_.1} parent=63 // pred_check
          %p693 = pneg %p255
        $region78: #{_lambda_.1} parent=63 // pred_check_branch
          %695 = sbr.rel (%p693) target = $region80
        $region79: #{_lambda_.1} parent=63 // pred_region
          %p696 = scmp.lt.s32.totalorder %s31, 1
          %s697 = scalar_select %p696, %s31, 1
          %s698 = scalar_lea.vmem %s9, %s697
        $region80: #{_lambda_.1} parent=63 // pred_fallthru
          _
        // Predicated region
        $region81: #{_lambda_.1} parent=63 // pred_check
          %p699 = pneg %p281
        $region82: #{_lambda_.1} parent=63 // pred_check_branch
          %701 = sbr.rel (%p699) target = $region84
        $region83: #{_lambda_.1} parent=63 // pred_region
          %p702 = scmp.lt.s32.totalorder %s31, 1
          %s703 = scalar_select %p702, %s31, 1
          %s704 = scalar_lea.vmem %s10, %s703
        $region84: #{_lambda_.1} parent=63 // pred_fallthru
          _
        // Predicated region
        $region85: #{_lambda_.1} parent=63 // pred_check
          %p705 = pneg %p307
        $region86: #{_lambda_.1} parent=63 // pred_check_branch
          %707 = sbr.rel (%p705) target = $region88
        $region87: #{_lambda_.1} parent=63 // pred_region
          %p708 = scmp.lt.s32.totalorder %s31, 1
          %s709 = scalar_select %p708, %s31, 1
          %s710 = scalar_lea.vmem %s11, %s709
        $region88: #{_lambda_.1} parent=63 // pred_fallthru
          _
        // Predicated region
        $region89: #{_lambda_.1} parent=63 // pred_check
          %p711 = pneg %p333
        $region90: #{_lambda_.1} parent=63 // pred_check_branch
          %713 = sbr.rel (%p711) target = $region92
        $region91: #{_lambda_.1} parent=63 // pred_region
          %p714 = scmp.lt.s32.totalorder %s31, 1
          %s715 = scalar_select %p714, %s31, 1
          %s716 = smul.addr %s715, 4
          %s717 = smul.addr %s716, 4
          %s718 = scalar_lea.vmem %s12, %s717
        $region92: #{_lambda_.1} parent=63 // pred_fallthru
          _
        // Predicated region
        $region93: #{_lambda_.1} parent=63 // pred_check
          %p719 = pneg %p359
        $region94: #{_lambda_.1} parent=63 // pred_check_branch
          %721 = sbr.rel (%p719) target = $region96
        $region95: #{_lambda_.1} parent=63 // pred_region
          %p722 = scmp.lt.s32.totalorder %s31, 1
          %s723 = scalar_select %p722, %s31, 1
          %s724 = scalar_lea.vmem %s13, %s723
        $region96: #{_lambda_.1} parent=63 // pred_fallthru
          _
        // Predicated region
        $region97: #{_lambda_.1} parent=63 // pred_check
          %p725 = pneg %p385
        $region98: #{_lambda_.1} parent=63 // pred_check_branch
          %727 = sbr.rel (%p725) target = $region100
        $region99: #{_lambda_.1} parent=63 // pred_region
          %p728 = scmp.lt.s32.totalorder %s31, 1
          %s729 = scalar_select %p728, %s31, 1
          %s730 = smul.addr %s729, 8
          %s731 = smul.addr %s730, 4
          %s732 = scalar_lea.vmem %s14, %s731
        $region100: #{_lambda_.1} parent=63 // pred_fallthru
          _
        // Predicated region
        $region101: #{_lambda_.1} parent=63 // pred_check
          %p733 = pneg %p411
        $region102: #{_lambda_.1} parent=63 // pred_check_branch
          %735 = sbr.rel (%p733) target = $region104
        $region103: #{_lambda_.1} parent=63 // pred_region
          %p736 = scmp.lt.s32.totalorder %s31, 1
          %s737 = scalar_select %p736, %s31, 1
          %s738 = scalar_lea.vmem %s15, %s737
        $region104: #{_lambda_.1} parent=63 // pred_fallthru
          _
        // Predicated region
        $region105: #{_lambda_.1} parent=63 // pred_check
          %p739 = pneg %p437
        $region106: #{_lambda_.1} parent=63 // pred_check_branch
          %741 = sbr.rel (%p739) target = $region108
        $region107: #{_lambda_.1} parent=63 // pred_region
          %p742 = scmp.lt.s32.totalorder %s31, 1
          %s743 = scalar_select %p742, %s31, 1
          %s744 = scalar_lea.vmem %s16, %s743
        $region108: #{_lambda_.1} parent=63 // pred_fallthru
          _
        // Predicated region
        $region109: #{_lambda_.1} parent=63 // pred_check
          %p745 = pneg %p463
        $region110: #{_lambda_.1} parent=63 // pred_check_branch
          %747 = sbr.rel (%p745) target = $region112
        $region111: #{_lambda_.1} parent=63 // pred_region
          %p748 = scmp.lt.s32.totalorder %s31, 1
          %s749 = scalar_select %p748, %s31, 1
          %s750 = scalar_lea.vmem %s17, %s749
        $region112: #{_lambda_.1} parent=63 // pred_fallthru
          _
      $region64: #{_lambda_.1} parent=5 // pred_fallthru
        _
      %p751 = scmp.le.s32.totalorder 1, %s31
      %p752 = scmp.lt.s32.totalorder %s31, 3
      %p753 = pnand %p751, %p752
      %p754 = pneg %p753
      // Predicated region
      $region113: #{_lambda_.1} parent=5 // pred_check
        _
      $region114: #{_lambda_.1} parent=5 // pred_check_branch
        %756 = sbr.rel (%p753) target = $region116
      $region115: #{_lambda_.1} parent=5 // pred_region
        %s757 = ssub.s32 %s31, 1
        %p758 = pneg %p52
        %p759 = pneg %p49
        %p760 = pneg %p73
        %p761 = pneg %p70
        %p762 = pneg %p94
        %p763 = pneg %p91
        %p764 = pneg %p115
        %p765 = pneg %p112
        %p766 = pneg %p136
        %p767 = pneg %p133
        %p768 = pneg %p157
        %p769 = pneg %p154
        %p770 = scmp.lt.s32.totalorder %s36, 1
        %s771 = scalar_select %p770, %s36, 1
        %s772 = smul.addr %s771, 4
        %s773 = smul.addr %s772, 4
        %s774 = scalar_lea.vmem %s6, %s773
        %p775 = pneg %p183
        %p776 = pneg %p180
        %p777 = scmp.lt.s32.totalorder %s36, 1
        %s778 = scalar_select %p777, %s36, 1
        %s779 = scalar_lea.vmem %s7, %s778
        %p780 = pneg %p209
        %p781 = pneg %p206
        %p782 = scmp.lt.s32.totalorder %s36, 1
        %s783 = scalar_select %p782, %s36, 1
        %s784 = smul.addr %s783, 4
        %s785 = smul.addr %s784, 4
        %s786 = scalar_lea.vmem %s8, %s785
        %p787 = pneg %p235
        %p788 = pneg %p232
        %p789 = scmp.lt.s32.totalorder %s36, 1
        %s790 = scalar_select %p789, %s36, 1
        %s791 = scalar_lea.vmem %s9, %s790
        %p792 = pneg %p261
        %p793 = pneg %p258
        %p794 = scmp.lt.s32.totalorder %s36, 1
        %s795 = scalar_select %p794, %s36, 1
        %s796 = scalar_lea.vmem %s10, %s795
        %p797 = pneg %p287
        %p798 = pneg %p284
        %p799 = scmp.lt.s32.totalorder %s36, 1
        %s800 = scalar_select %p799, %s36, 1
        %s801 = scalar_lea.vmem %s11, %s800
        %p802 = pneg %p313
        %p803 = pneg %p310
        %p804 = scmp.lt.s32.totalorder %s36, 1
        %s805 = scalar_select %p804, %s36, 1
        %s806 = smul.addr %s805, 4
        %s807 = smul.addr %s806, 4
        %s808 = scalar_lea.vmem %s12, %s807
        %p809 = pneg %p339
        %p810 = pneg %p336
        %p811 = scmp.lt.s32.totalorder %s36, 1
        %s812 = scalar_select %p811, %s36, 1
        %s813 = scalar_lea.vmem %s13, %s812
        %p814 = pneg %p365
        %p815 = pneg %p362
        %p816 = scmp.lt.s32.totalorder %s36, 1
        %s817 = scalar_select %p816, %s36, 1
        %s818 = smul.addr %s817, 8
        %s819 = smul.addr %s818, 4
        %s820 = scalar_lea.vmem %s14, %s819
        %p821 = pneg %p391
        %p822 = pneg %p388
        %p823 = scmp.lt.s32.totalorder %s36, 1
        %s824 = scalar_select %p823, %s36, 1
        %s825 = scalar_lea.vmem %s15, %s824
        %p826 = pneg %p417
        %p827 = pneg %p414
        %p828 = scmp.lt.s32.totalorder %s36, 1
        %s829 = scalar_select %p828, %s36, 1
        %s830 = scalar_lea.vmem %s16, %s829
        %p831 = pneg %p443
        %p832 = pneg %p440
        %p833 = scmp.lt.s32.totalorder %s36, 1
        %s834 = scalar_select %p833, %s36, 1
        %s835 = scalar_lea.vmem %s17, %s834
        %p836 = pneg %p469
        %p837 = pneg %p466
        %p838 = pneg %p490
        %p839 = pneg %p487
        %p840 = pneg %p511
        %p841 = pneg %p508
        %p842 = pneg %p532
        %p843 = pneg %p529
        %p844 = pneg %p553
        %p845 = pneg %p550
        %p846 = pneg %p574
        %p847 = pneg %p571
        %p848 = pneg %p595
        %p849 = pneg %p592
        %p850 = pneg %p616
        %p851 = pneg %p613
        %p852 = scmp.lt.s32.totalorder %s36, 1
        %s853 = scalar_select %p852, %s36, 1
        %s854 = smul.addr %s853, 4
        %s855 = smul.addr %s854, 4
        %s856 = scalar_lea.vmem %s6, %s855
        %p857 = scmp.lt.s32.totalorder %s36, 1
        %s858 = scalar_select %p857, %s36, 1
        %s859 = scalar_lea.vmem %s7, %s858
        %p860 = scmp.lt.s32.totalorder %s36, 1
        %s861 = scalar_select %p860, %s36, 1
        %s862 = smul.addr %s861, 4
        %s863 = smul.addr %s862, 4
        %s864 = scalar_lea.vmem %s8, %s863
        %p865 = scmp.lt.s32.totalorder %s36, 1
        %s866 = scalar_select %p865, %s36, 1
        %s867 = scalar_lea.vmem %s9, %s866
        %p868 = scmp.lt.s32.totalorder %s36, 1
        %s869 = scalar_select %p868, %s36, 1
        %s870 = scalar_lea.vmem %s10, %s869
        %p871 = scmp.lt.s32.totalorder %s36, 1
        %s872 = scalar_select %p871, %s36, 1
        %s873 = scalar_lea.vmem %s11, %s872
        %p874 = scmp.lt.s32.totalorder %s36, 1
        %s875 = scalar_select %p874, %s36, 1
        %s876 = smul.addr %s875, 4
        %s877 = smul.addr %s876, 4
        %s878 = scalar_lea.vmem %s12, %s877
        %p879 = scmp.lt.s32.totalorder %s36, 1
        %s880 = scalar_select %p879, %s36, 1
        %s881 = scalar_lea.vmem %s13, %s880
        %p882 = scmp.lt.s32.totalorder %s36, 1
        %s883 = scalar_select %p882, %s36, 1
        %s884 = smul.addr %s883, 8
        %s885 = smul.addr %s884, 4
        %s886 = scalar_lea.vmem %s14, %s885
        %p887 = scmp.lt.s32.totalorder %s36, 1
        %s888 = scalar_select %p887, %s36, 1
        %s889 = scalar_lea.vmem %s15, %s888
        %p890 = scmp.lt.s32.totalorder %s36, 1
        %s891 = scalar_select %p890, %s36, 1
        %s892 = scalar_lea.vmem %s16, %s891
        %p893 = scmp.lt.s32.totalorder %s36, 1
        %s894 = scalar_select %p893, %s36, 1
        %s895 = scalar_lea.vmem %s17, %s894
        %p897 = scmp.eq.s32.totalorder %s36, 0
        // Predicated region
        $region117: #{_lambda_.1} parent=115 // pred_check
          %p898 = pneg %p897
        $region118: #{_lambda_.1} parent=115 // pred_check_branch
          %900 = sbr.rel (%p898) target = $region120
        $region119: #{_lambda_.1} parent=115 // pred_region
          %v901 = vld [vmem:[%s0] sm:$0xff]
          %v902 = vld [vmem:[%s0 + $0x8] sm:$0xff]
          %v903 = vld [vmem:[%s4] sm:$0x1]
          %v904 = vld [vmem:[%s5] sm:$0x1]
          %vm905 = vcmask 261120
          %v906 = vsel %vm905, %v901, 0.0
          %907 = vadd.xlane.f32.xlu0 %v906
          %v908 = vpop.xlane.xlu0 %907
          %v909 = vsel %vm905, %v902, 0.0
          %910 = vadd.xlane.f32.xlu0 %v909
          %v911 = vpop.xlane.xlu0 %910
          %v912 = vrcp.pop 32.0
          %v913 = vmul.f32 32.0, %v912
          %v914 = vsub.f32 1.0, %v913
          %v915 = vmul.f32 %v912, %v914
          %v916 = vadd.f32 %v912, %v915
          %vm917 = vweird.f32 %v912
          %v918 = vsel %vm917, %v912, %v916
          %v919 = vmul.f32 %v908, %v918
          %v920 = vmul.f32 %v911, %v918
          %v921 = vsub.f32 %v901, %v919
          %v922 = vsub.f32 %v902, %v920
          %v923 = vmul.f32 %v921, %v921
          %v924 = vmul.f32 %v922, %v922
          %v925 = vsel %vm905, %v923, 0.0
          %926 = vadd.xlane.f32.xlu0 %v925
          %v927 = vpop.xlane.xlu0 %926
          %v928 = vsel %vm905, %v924, 0.0
          %929 = vadd.xlane.f32.xlu0 %v928
          %v930 = vpop.xlane.xlu0 %929
          %v931 = vmul.f32 %v927, %v918
          %v932 = vmul.f32 %v930, %v918
          %v933 = vadd.f32 %v931, 1e-12
          %v934 = vadd.f32 %v932, 1e-12
          %v935 = vrsqrt.pop %v933
          %v936 = vmul.f32 %v935, %v933
          %v937 = vmul.f32 %v936, %v935
          %v938 = vmul.f32 0.5, %v937
          %v939 = vsub.f32 1.5, %v938
          %v940 = vmul.f32 %v935, %v939
          %vm941 = vweird.f32 %v933
          %vm942 = vweird.f32 %v935
          %vm943 = vmor %vm941, %vm942
          %v944 = vsel %vm943, %v935, %v940
          %v945 = vrsqrt.pop %v934
          %v946 = vmul.f32 %v945, %v934
          %v947 = vmul.f32 %v946, %v945
          %v948 = vmul.f32 0.5, %v947
          %v949 = vsub.f32 1.5, %v948
          %v950 = vmul.f32 %v945, %v949
          %vm951 = vweird.f32 %v934
          %vm952 = vweird.f32 %v945
          %vm953 = vmor %vm951, %vm952
          %v954 = vsel %vm953, %v945, %v950
          %v955 = vmul.f32 %v921, %v944
          %v956 = vmul.f32 %v922, %v954
          %v958 = vperm.slane %v903, 0
          %v960 = vmul.f32 %v955, %v958
          %v961 = vmul.f32 %v956, %v958
          %v963 = vperm.slane %v904, 0
          %v965 = vadd.f32 %v960, %v963
          %v966 = vadd.f32 %v961, %v963
          %967 = vst.msk [vmem:[#allocation2] sm:$0xff] %vm905, %v965
          %968 = vst.msk [vmem:[#allocation2 + $0x8] sm:$0xff] %vm905, %v966
          %969 = vst [vmem:[#allocation3] sm:$0x3] 0.0
        $region120: #{_lambda_.1} parent=115 // pred_fallthru
          _
        %v970 = vld [vmem:[#allocation2] sm:$0xff]
        %v971 = vld [vmem:[#allocation2 + $0x8] sm:$0xff]
        %v972 = vld [vmem:[%s1] sm:$0x3]
        %974 = vrot.lane.b32.xlu0 %v972, 8
        %v975 = vpop.permute.xlu0 %974
        %977 = vrot.lane.b32.xlu0 %v972, 16
        %v978 = vpop.permute.xlu0 %977
        %980 = vrot.lane.b32.xlu0 %v972, 24
        %v981 = vpop.permute.xlu0 %980
        %vm983 = vcmask 64512
        %v984 = vsel %vm983, %v972, %v975
        %vm985 = vcmask 130048
        %v986 = vsel %vm985, %v984, %v978
        %vm987 = vcmask 195584
        %v988 = vsel %vm987, %v986, %v981
        %v990 = vrot.slane %v988, 1
        %v991 = vperm.slane %v988, 0
        %v992 = vperm.slane %v990, 0
        %v995 = vld [vmem:[%s2] sm:$0xff]
        %v996 = vld [vmem:[%s2 + $0x8] sm:$0xff]
        %v997 = vld [vmem:[%s2 + $0x10] sm:$0xff]
        %v998 = vld [vmem:[%s2 + $0x18] sm:$0xff]
        %v999 = vld [vmem:[%s856] sm:$0xf]
        %v1000 = vld [vmem:[%s856 + $0x4] sm:$0xf]
        %v1001 = vld [vmem:[%s856 + $0x8] sm:$0xf]
        %v1002 = vld [vmem:[%s856 + $0xc] sm:$0xf]
        %v1003 = vpack.c.bf16 %v971, %v970
        %v1004 = vld [vmem:[%s859] sm:$0x1]
        %v1006 = vperm.slane %v1004, 0
        %v1012 = vunpack.c.l.b16 %v999
        %v1013 = vunpack.c.l.b16 %v1000
        %v1014 = vunpack.c.l.b16 %v1001
        %v1015 = vunpack.c.l.b16 %v1002
        %v1016 = vpack.c.b16 %v1013, %v1012
        %v1017 = vpack.c.b16 %v1015, %v1014
        %vm1020 = vcmask 261120
        %v1022 = vsel %vm1020, %v1003, 0
        %1024 = vmatpush.bf16.msra.mxu0 0
        %1025 = vmatpush.bf16.msra.mxu0 0
        %1026 = vmatpush.bf16.msra.mxu0 0
        %1027 = vmatpush.bf16.msra.mxu0 0
        %1028 = vmatpush.bf16.msra.mxu0 0
        %1029 = vmatpush.bf16.msra.mxu0 0
        %1030 = vmatpush.bf16.msra.mxu0 %v1017
        %1031 = vmatpush.bf16.msra.mxu0 %v1016
        %1032 = vmatmul.bf16.gmra.mxu0 %v1022
        %v1033 = vpop.f32.mrf.mxu0
        %v1034 = vadd.f32 %v1006, %v1033
        %v1035 = vpop.f32.mrf.mxu0
        %v1036 = vadd.f32 %v1006, %v1035
        %1037 = vdwg.mxu0
        %1042 = vrot.lane.b32.xlu0 %v995, 32
        %v1043 = vpop.permute.xlu0 %1042
        %1044 = vrot.lane.b32.xlu0 %v996, 32
        %v1045 = vpop.permute.xlu0 %1044
        %1046 = vrot.lane.b32.xlu0 %v997, 32
        %v1047 = vpop.permute.xlu0 %1046
        %1048 = vrot.lane.b32.xlu0 %v998, 32
        %v1049 = vpop.permute.xlu0 %1048
        %v1054 = vmul.f32 %v1034, %v1043
        %v1055 = vmul.f32 %v1034, %v1045
        %v1056 = vmul.f32 %v1034, %v1047
        %v1057 = vmul.f32 %v1034, %v1049
        %v1058 = vmul.f32 %v1036, %v1043
        %v1059 = vmul.f32 %v1036, %v1045
        %v1060 = vmul.f32 %v1036, %v1047
        %v1061 = vmul.f32 %v1036, %v1049
        %1062 = vrot.lane.b32.xlu0 %v995, 64
        %v1063 = vpop.permute.xlu0 %1062
        %1064 = vrot.lane.b32.xlu0 %v996, 64
        %v1065 = vpop.permute.xlu0 %1064
        %1066 = vrot.lane.b32.xlu0 %v997, 64
        %v1067 = vpop.permute.xlu0 %1066
        %1068 = vrot.lane.b32.xlu0 %v998, 64
        %v1069 = vpop.permute.xlu0 %1068
        %v1074 = vmul.f32 %v1034, %v1063
        %v1075 = vmul.f32 %v1034, %v1065
        %v1076 = vmul.f32 %v1034, %v1067
        %v1077 = vmul.f32 %v1034, %v1069
        %v1078 = vmul.f32 %v1036, %v1063
        %v1079 = vmul.f32 %v1036, %v1065
        %v1080 = vmul.f32 %v1036, %v1067
        %v1081 = vmul.f32 %v1036, %v1069
        %v1082 = vpack.c.bf16 %v1034, %v1034
        %v1083 = vpack.c.bf16 %v1036, %v1036
        %v1084 = vpack.c.bf16 %v1054, %v1054
        %v1085 = vpack.c.bf16 %v1055, %v1055
        %v1086 = vpack.c.bf16 %v1056, %v1056
        %v1087 = vpack.c.bf16 %v1057, %v1057
        %v1088 = vpack.c.bf16 %v1058, %v1058
        %v1089 = vpack.c.bf16 %v1059, %v1059
        %v1090 = vpack.c.bf16 %v1060, %v1060
        %v1091 = vpack.c.bf16 %v1061, %v1061
        %v1096 = vunpack.c.l.b16 %v1084
        %v1097 = vunpack.c.l.b16 %v1085
        %v1098 = vunpack.c.l.b16 %v1086
        %v1099 = vunpack.c.l.b16 %v1087
        %v1100 = vpack.c.b16 %v1097, %v1096
        %v1101 = vpack.c.b16 %v1099, %v1098
        %1102 = vrot.lane.b32.xlu0 %v1100, 96
        %v1103 = vpop.permute.xlu0 %1102
        %1104 = vrot.lane.b32.xlu0 %v1101, 96
        %v1105 = vpop.permute.xlu0 %1104
        %v1107 = vsel %vm1020, %v1082, 0
        %v1110 = vsel %vm1020, %v1103, 0
        %v1113 = vsel %vm1020, %v1105, 0
        %1115 = vmatpush.bf16.xpose.msra.mxu0 0
        %1116 = vmatpush.bf16.xpose.msra.mxu0 0
        %1117 = vmatpush.bf16.xpose.msra.mxu0 0
        %1118 = vmatpush.bf16.xpose.msra.mxu0 0
        %1119 = vmatpush.bf16.xpose.msra.mxu0 0
        %1120 = vmatpush.bf16.xpose.msra.mxu0 0
        %1121 = vmatpush.bf16.xpose.msra.mxu0 %v1113
        %1122 = vmatpush.bf16.xpose.msra.mxu0 %v1110
        %1123 = vmatmul.bf16.gmra.mxu0 %v1107
        %v1124 = vpop.f32.mrf.mxu0
        %v1125 = vadd.f32 0.0, %v1124
        %v1126 = vpop.f32.mrf.mxu0
        %1127 = vdwg.mxu0
        %v1132 = vunpack.c.l.b16 %v1088
        %v1133 = vunpack.c.l.b16 %v1089
        %v1134 = vunpack.c.l.b16 %v1090
        %v1135 = vunpack.c.l.b16 %v1091
        %v1136 = vpack.c.b16 %v1133, %v1132
        %v1137 = vpack.c.b16 %v1135, %v1134
        %1138 = vrot.lane.b32.xlu0 %v1136, 96
        %v1139 = vpop.permute.xlu0 %1138
        %1140 = vrot.lane.b32.xlu0 %v1137, 96
        %v1141 = vpop.permute.xlu0 %1140
        %v1143 = vsel %vm1020, %v1083, 0
        %v1146 = vsel %vm1020, %v1139, 0
        %v1149 = vsel %vm1020, %v1141, 0
        %1151 = vmatpush.bf16.xpose.msra.mxu0 0
        %1152 = vmatpush.bf16.xpose.msra.mxu0 0
        %1153 = vmatpush.bf16.xpose.msra.mxu0 0
        %1154 = vmatpush.bf16.xpose.msra.mxu0 0
        %1155 = vmatpush.bf16.xpose.msra.mxu0 0
        %1156 = vmatpush.bf16.xpose.msra.mxu0 0
        %1157 = vmatpush.bf16.xpose.msra.mxu0 %v1149
        %1158 = vmatpush.bf16.xpose.msra.mxu0 %v1146
        %1159 = vmatmul.bf16.gmra.mxu0 %v1143
        %v1160 = vpop.f32.mrf.mxu0
        %v1161 = vadd.f32 0.0, %v1160
        %v1162 = vpop.f32.mrf.mxu0
        %1163 = vdwg.mxu0
        %v1164 = vmul.f32 %v1125, 0.35355338
        %v1165 = vmul.f32 %v1161, 0.35355338
        %v1166 = vadd.f32 %v1164, %v991
        %v1167 = vadd.f32 %v1165, %v992
        %v1168 = vsel %vm1020, %v1166, -inf
        %1169 = vmax.xlane.f32.xlu0 %v1168
        %v1170 = vpop.xlane.xlu0 %1169
        %v1171 = vsel %vm1020, %v1167, -inf
        %1172 = vmax.xlane.f32.xlu0 %v1171
        %v1173 = vpop.xlane.xlu0 %1172
        %v1174 = vsub.f32 %v1166, %v1170
        %v1175 = vsub.f32 %v1167, %v1173
        %v1176 = vmul.f32 %v1174, 1.442695
        %v1177 = vpow.pop %v1176
        %v1178 = vmul.f32 %v1175, 1.442695
        %v1179 = vpow.pop %v1178
        %v1180 = vld [vmem:[%s3] sm:$0xff]
        %v1181 = vld [vmem:[%s3 + $0x8] sm:$0xff]
        %v1182 = vld [vmem:[%s3 + $0x10] sm:$0xff]
        %v1183 = vld [vmem:[%s3 + $0x18] sm:$0xff]
        %v1185 = vsel %vm1020, %v1177, 0
        %v1188 = vsel %vm1020, %v1179, 0
        %1190 = vmatpush.msra.mxu0 0.0
        %1191 = vmatpush.msra.mxu0 0.0
        %1192 = vmatpush.msra.mxu0 0.0
        %1193 = vmatpush.msra.mxu0 0.0
        %1194 = vmatpush.msra.mxu0 0.0
        %1195 = vmatpush.msra.mxu0 0.0
        %1196 = vmatpush.msra.mxu0 0.0
        %1197 = vmatpush.msra.mxu0 0.0
        %1198 = vmatpush.msra.mxu0 0.0
        %1199 = vmatpush.msra.mxu0 0.0
        %1200 = vmatpush.msra.mxu0 0.0
        %1201 = vmatpush.msra.mxu0 0.0
        %1202 = vmatpush.msra.mxu0 %v1183
        %1203 = vmatpush.msra.mxu0 %v1182
        %1204 = vmatpush.msra.mxu0 %v1181
        %1205 = vmatpush.msra.mxu0 %v1180
        %1206 = vmatmul.f32.gmra.mxu0 %v1185
        %v1207 = vpop.f32.mrf.mxu0
        %v1208 = vadd.f32 0.0, %v1207
        %1209 = vmatmul.f32.gmra.mxu0 %v1188
        %v1210 = vpop.f32.mrf.mxu0
        %v1211 = vadd.f32 0.0, %v1210
        %1212 = vdwg.mxu0
        %v1213 = vrcp.pop %v1208
        %v1214 = vmul.f32 %v1208, %v1213
        %v1215 = vsub.f32 1.0, %v1214
        %v1216 = vmul.f32 %v1213, %v1215
        %v1217 = vadd.f32 %v1213, %v1216
        %vm1218 = vweird.f32 %v1208
        %vm1219 = vweird.f32 %v1213
        %vm1220 = vmor %vm1218, %vm1219
        %v1221 = vsel %vm1220, %v1213, %v1217
        %v1222 = vand.u32 2147483647, %v1208
        %vm1223 = vcmp.eq.f32.partialorder %v1222, 8.507059e+37
        %v1224 = vand.u32 %v1208, 2147483648
        %v1225 = vor.u32 1.1754944e-38, %v1224
        %v1226 = vsel %vm1223, %v1225, %v1221
        %v1227 = vmul.f32 %v1177, %v1226
        %v1228 = vrcp.pop %v1211
        %v1229 = vmul.f32 %v1211, %v1228
        %v1230 = vsub.f32 1.0, %v1229
        %v1231 = vmul.f32 %v1228, %v1230
        %v1232 = vadd.f32 %v1228, %v1231
        %vm1233 = vweird.f32 %v1211
        %vm1234 = vweird.f32 %v1228
        %vm1235 = vmor %vm1233, %vm1234
        %v1236 = vsel %vm1235, %v1228, %v1232
        %v1237 = vand.u32 2147483647, %v1211
        %vm1238 = vcmp.eq.f32.partialorder %v1237, 8.507059e+37
        %v1239 = vand.u32 %v1211, 2147483648
        %v1240 = vor.u32 1.1754944e-38, %v1239
        %v1241 = vsel %vm1238, %v1240, %v1236
        %v1242 = vmul.f32 %v1179, %v1241
        %v1243 = vpack.c.bf16 %v1227, %v1227
        %v1244 = vpack.c.bf16 %v1242, %v1242
        %v1245 = vpack.c.bf16 %v1074, %v1074
        %v1246 = vpack.c.bf16 %v1075, %v1075
        %v1247 = vpack.c.bf16 %v1076, %v1076
        %v1248 = vpack.c.bf16 %v1077, %v1077
        %v1249 = vpack.c.bf16 %v1078, %v1078
        %v1250 = vpack.c.bf16 %v1079, %v1079
        %v1251 = vpack.c.bf16 %v1080, %v1080
        %v1252 = vpack.c.bf16 %v1081, %v1081
        %v1257 = vunpack.c.l.b16 %v1245
        %v1258 = vunpack.c.l.b16 %v1246
        %v1259 = vunpack.c.l.b16 %v1247
        %v1260 = vunpack.c.l.b16 %v1248
        %v1261 = vpack.c.b16 %v1258, %v1257
        %v1262 = vpack.c.b16 %v1260, %v1259
        %1263 = vrot.lane.b32.xlu0 %v1261, 64
        %v1264 = vpop.permute.xlu0 %1263
        %1265 = vrot.lane.b32.xlu0 %v1262, 64
        %v1266 = vpop.permute.xlu0 %1265
        %v1270 = vsel %vm1020, %v1243, 0
        %1272 = vmatpush.bf16.msra.mxu0 0
        %1273 = vmatpush.bf16.msra.mxu0 0
        %1274 = vmatpush.bf16.msra.mxu0 0
        %1275 = vmatpush.bf16.msra.mxu0 0
        %1276 = vmatpush.bf16.msra.mxu0 0
        %1277 = vmatpush.bf16.msra.mxu0 0
        %1278 = vmatpush.bf16.msra.mxu0 %v1266
        %1279 = vmatpush.bf16.msra.mxu0 %v1264
        %1280 = vmatmul.bf16.gmra.mxu0 %v1270
        %v1281 = vpop.f32.mrf.mxu0
        %v1282 = vadd.f32 0.0, %v1281
        %v1283 = vpop.f32.mrf.mxu0
        %1284 = vdwg.mxu0
        %v1289 = vunpack.c.l.b16 %v1249
        %v1290 = vunpack.c.l.b16 %v1250
        %v1291 = vunpack.c.l.b16 %v1251
        %v1292 = vunpack.c.l.b16 %v1252
        %v1293 = vpack.c.b16 %v1290, %v1289
        %v1294 = vpack.c.b16 %v1292, %v1291
        %1295 = vrot.lane.b32.xlu0 %v1293, 64
        %v1296 = vpop.permute.xlu0 %1295
        %1297 = vrot.lane.b32.xlu0 %v1294, 64
        %v1298 = vpop.permute.xlu0 %1297
        %v1302 = vsel %vm1020, %v1244, 0
        %1304 = vmatpush.bf16.msra.mxu0 0
        %1305 = vmatpush.bf16.msra.mxu0 0
        %1306 = vmatpush.bf16.msra.mxu0 0
        %1307 = vmatpush.bf16.msra.mxu0 0
        %1308 = vmatpush.bf16.msra.mxu0 0
        %1309 = vmatpush.bf16.msra.mxu0 0
        %1310 = vmatpush.bf16.msra.mxu0 %v1298
        %1311 = vmatpush.bf16.msra.mxu0 %v1296
        %1312 = vmatmul.bf16.gmra.mxu0 %v1302
        %v1313 = vpop.f32.mrf.mxu0
        %v1314 = vadd.f32 0.0, %v1313
        %v1315 = vpop.f32.mrf.mxu0
        %1316 = vdwg.mxu0
        %v1317 = vld [vmem:[%s864] sm:$0xf]
        %v1318 = vld [vmem:[%s864 + $0x4] sm:$0xf]
        %v1319 = vld [vmem:[%s864 + $0x8] sm:$0xf]
        %v1320 = vld [vmem:[%s864 + $0xc] sm:$0xf]
        %v1321 = vpack.c.bf16 %v1314, %v1282
        %v1322 = vld [vmem:[%s867] sm:$0x1]
        %v1324 = vperm.slane %v1322, 0
        %v1330 = vunpack.c.l.b16 %v1317
        %v1331 = vunpack.c.l.b16 %v1318
        %v1332 = vunpack.c.l.b16 %v1319
        %v1333 = vunpack.c.l.b16 %v1320
        %v1334 = vpack.c.b16 %v1331, %v1330
        %v1335 = vpack.c.b16 %v1333, %v1332
        %v1339 = vsel %vm1020, %v1321, 0
        %1341 = vmatpush.bf16.msra.mxu0 0
        %1342 = vmatpush.bf16.msra.mxu0 0
        %1343 = vmatpush.bf16.msra.mxu0 0
        %1344 = vmatpush.bf16.msra.mxu0 0
        %1345 = vmatpush.bf16.msra.mxu0 0
        %1346 = vmatpush.bf16.msra.mxu0 0
        %1347 = vmatpush.bf16.msra.mxu0 %v1335
        %1348 = vmatpush.bf16.msra.mxu0 %v1334
        %1349 = vmatmul.bf16.gmra.mxu0 %v1339
        %v1350 = vpop.f32.mrf.mxu0
        %v1351 = vadd.f32 %v1324, %v1350
        %v1352 = vpop.f32.mrf.mxu0
        %v1353 = vadd.f32 %v1324, %v1352
        %1354 = vdwg.mxu0
        %v1355 = vadd.f32 %v1351, %v970
        %v1356 = vadd.f32 %v1353, %v971
        %v1357 = vld [vmem:[%s870] sm:$0x1]
        %v1358 = vld [vmem:[%s873] sm:$0x1]
        %v1359 = vsel %vm1020, %v1355, 0.0
        %1360 = vadd.xlane.f32.xlu0 %v1359
        %v1361 = vpop.xlane.xlu0 %1360
        %v1362 = vsel %vm1020, %v1356, 0.0
        %1363 = vadd.xlane.f32.xlu0 %v1362
        %v1364 = vpop.xlane.xlu0 %1363
        %v1365 = vrcp.pop 32.0
        %v1366 = vmul.f32 32.0, %v1365
        %v1367 = vsub.f32 1.0, %v1366
        %v1368 = vmul.f32 %v1365, %v1367
        %v1369 = vadd.f32 %v1365, %v1368
        %vm1370 = vweird.f32 %v1365
        %v1371 = vsel %vm1370, %v1365, %v1369
        %v1372 = vmul.f32 %v1361, %v1371
        %v1373 = vmul.f32 %v1364, %v1371
        %v1374 = vsub.f32 %v1355, %v1372
        %v1375 = vsub.f32 %v1356, %v1373
        %v1376 = vmul.f32 %v1374, %v1374
        %v1377 = vmul.f32 %v1375, %v1375
        %v1378 = vsel %vm1020, %v1376, 0.0
        %1379 = vadd.xlane.f32.xlu0 %v1378
        %v1380 = vpop.xlane.xlu0 %1379
        %v1381 = vsel %vm1020, %v1377, 0.0
        %1382 = vadd.xlane.f32.xlu0 %v1381
        %v1383 = vpop.xlane.xlu0 %1382
        %v1384 = vmul.f32 %v1380, %v1371
        %v1385 = vmul.f32 %v1383, %v1371
        %v1386 = vadd.f32 %v1384, 1e-12
        %v1387 = vadd.f32 %v1385, 1e-12
        %v1388 = vrsqrt.pop %v1386
        %v1389 = vmul.f32 %v1388, %v1386
        %v1390 = vmul.f32 %v1389, %v1388
        %v1391 = vmul.f32 0.5, %v1390
        %v1392 = vsub.f32 1.5, %v1391
        %v1393 = vmul.f32 %v1388, %v1392
        %vm1394 = vweird.f32 %v1386
        %vm1395 = vweird.f32 %v1388
        %vm1396 = vmor %vm1394, %vm1395
        %v1397 = vsel %vm1396, %v1388, %v1393
        %v1398 = vrsqrt.pop %v1387
        %v1399 = vmul.f32 %v1398, %v1387
        %v1400 = vmul.f32 %v1399, %v1398
        %v1401 = vmul.f32 0.5, %v1400
        %v1402 = vsub.f32 1.5, %v1401
        %v1403 = vmul.f32 %v1398, %v1402
        %vm1404 = vweird.f32 %v1387
        %vm1405 = vweird.f32 %v1398
        %vm1406 = vmor %vm1404, %vm1405
        %v1407 = vsel %vm1406, %v1398, %v1403
        %v1408 = vmul.f32 %v1374, %v1397
        %v1409 = vmul.f32 %v1375, %v1407
        %v1411 = vperm.slane %v1357, 0
        %v1413 = vmul.f32 %v1408, %v1411
        %v1414 = vmul.f32 %v1409, %v1411
        %v1416 = vperm.slane %v1358, 0
        %v1418 = vadd.f32 %v1413, %v1416
        %v1419 = vadd.f32 %v1414, %v1416
        %v1420 = vld [vmem:[%s878] sm:$0xf]
        %v1421 = vld [vmem:[%s878 + $0x4] sm:$0xf]
        %v1422 = vld [vmem:[%s878 + $0x8] sm:$0xf]
        %v1423 = vld [vmem:[%s878 + $0xc] sm:$0xf]
        %v1424 = vpack.c.bf16 %v1419, %v1418
        %v1425 = vld [vmem:[%s881] sm:$0x1]
        %v1427 = vperm.slane %v1425, 0
        %v1433 = vunpack.c.l.b16 %v1420
        %v1434 = vunpack.c.l.b16 %v1421
        %v1435 = vunpack.c.l.b16 %v1422
        %v1436 = vunpack.c.l.b16 %v1423
        %v1437 = vpack.c.b16 %v1434, %v1433
        %v1438 = vpack.c.b16 %v1436, %v1435
        %v1442 = vsel %vm1020, %v1424, 0
        %1444 = vmatpush.bf16.msra.mxu0 0
        %1445 = vmatpush.bf16.msra.mxu0 0
        %1446 = vmatpush.bf16.msra.mxu0 0
        %1447 = vmatpush.bf16.msra.mxu0 0
        %1448 = vmatpush.bf16.msra.mxu0 0
        %1449 = vmatpush.bf16.msra.mxu0 0
        %1450 = vmatpush.bf16.msra.mxu0 %v1438
        %1451 = vmatpush.bf16.msra.mxu0 %v1437
        %1452 = vmatmul.bf16.gmra.mxu0 %v1442
        %v1453 = vpop.f32.mrf.mxu0
        %v1454 = vadd.f32 %v1427, %v1453
        %v1455 = vpop.f32.mrf.mxu0
        %v1456 = vadd.f32 %v1427, %v1455
        %1457 = vdwg.mxu0
        %v1458 = vmul.f32 %v1454, 0.70710677
        %v1459 = vmul.f32 %v1456, 0.70710677
        %v1460 = vand.u32 2147483647, %v1458
        %v1461 = vand.u32 2147483647, %v1459
        %v1462 = vmul.f32 %v1460, 0.3275911
        %v1463 = vmul.f32 %v1461, 0.3275911
        %v1464 = vadd.f32 %v1462, 1.0
        %v1465 = vadd.f32 %v1463, 1.0
        %v1466 = vrcp.pop %v1464
        %v1467 = vmul.f32 %v1464, %v1466
        %v1468 = vsub.f32 1.0, %v1467
        %v1469 = vmul.f32 %v1466, %v1468
        %v1470 = vadd.f32 %v1466, %v1469
        %vm1471 = vweird.f32 %v1464
        %vm1472 = vweird.f32 %v1466
        %vm1473 = vmor %vm1471, %vm1472
        %v1474 = vsel %vm1473, %v1466, %v1470
        %v1475 = vand.u32 2147483647, %v1464
        %vm1476 = vcmp.eq.f32.partialorder %v1475, 8.507059e+37
        %v1477 = vand.u32 %v1464, 2147483648
        %v1478 = vor.u32 1.1754944e-38, %v1477
        %v1479 = vsel %vm1476, %v1478, %v1474
        %v1480 = vmul.f32 1.0, %v1479
        %v1481 = vrcp.pop %v1465
        %v1482 = vmul.f32 %v1465, %v1481
        %v1483 = vsub.f32 1.0, %v1482
        %v1484 = vmul.f32 %v1481, %v1483
        %v1485 = vadd.f32 %v1481, %v1484
        %vm1486 = vweird.f32 %v1465
        %vm1487 = vweird.f32 %v1481
        %vm1488 = vmor %vm1486, %vm1487
        %v1489 = vsel %vm1488, %v1481, %v1485
        %v1490 = vand.u32 2147483647, %v1465
        %vm1491 = vcmp.eq.f32.partialorder %v1490, 8.507059e+37
        %v1492 = vand.u32 %v1465, 2147483648
        %v1493 = vor.u32 1.1754944e-38, %v1492
        %v1494 = vsel %vm1491, %v1493, %v1489
        %v1495 = vmul.f32 1.0, %v1494
        %v1496 = vmul.f32 %v1480, 1.0614054
        %v1497 = vmul.f32 %v1495, 1.0614054
        %v1498 = vsub.f32 %v1496, 1.4531521
        %v1499 = vsub.f32 %v1497, 1.4531521
        %v1500 = vmul.f32 %v1498, %v1480
        %v1501 = vmul.f32 %v1499, %v1495
        %v1502 = vadd.f32 %v1500, 1.4214138
        %v1503 = vadd.f32 %v1501, 1.4214138
        %v1504 = vmul.f32 %v1502, %v1480
        %v1505 = vmul.f32 %v1503, %v1495
        %v1506 = vsub.f32 %v1504, 0.28449672
        %v1507 = vsub.f32 %v1505, 0.28449672
        %v1508 = vmul.f32 %v1506, %v1480
        %v1509 = vmul.f32 %v1507, %v1495
        %v1510 = vadd.f32 %v1508, 0.2548296
        %v1511 = vadd.f32 %v1509, 0.2548296
        %v1512 = vmul.f32 %v1510, %v1480
        %v1513 = vmul.f32 %v1511, %v1495
        %v1514 = vsub.f32 0.0, %v1460
        %v1515 = vsub.f32 0.0, %v1461
        %v1516 = vmul.f32 %v1514, %v1460
        %v1517 = vmul.f32 %v1515, %v1461
        %v1518 = vmul.f32 %v1516, 1.442695
        %v1519 = vpow.pop %v1518
        %v1520 = vmul.f32 %v1517, 1.442695
        %v1521 = vpow.pop %v1520
        %v1522 = vmul.f32 %v1512, %v1519
        %v1523 = vmul.f32 %v1513, %v1521
        %v1524 = vsub.f32 1.0, %v1522
        %v1525 = vsub.f32 1.0, %v1523
        %vm1526 = vcmp.lt.f32.partialorder %v1458, 0.0
        %vm1527 = vcmp.lt.f32.partialorder %v1459, 0.0
        %v1528 = vsub.f32 0.0, %v1524
        %v1529 = vsub.f32 0.0, %v1525
        %v1530 = vsel %vm1526, %v1528, %v1524
        %v1531 = vsel %vm1527, %v1529, %v1525
        %v1532 = vmul.f32 %v1454, 0.5
        %v1533 = vmul.f32 %v1456, 0.5
        %v1534 = vadd.f32 %v1530, 1.0
        %v1535 = vadd.f32 %v1531, 1.0
        %v1536 = vmul.f32 %v1532, %v1534
        %v1537 = vmul.f32 %v1533, %v1535
        %v1538 = vld [vmem:[%s886] sm:$0xf]
        %v1539 = vld [vmem:[%s886 + $0x4] sm:$0xf]
        %v1540 = vld [vmem:[%s886 + $0x8] sm:$0xf]
        %v1541 = vld [vmem:[%s886 + $0xc] sm:$0xf]
        %v1542 = vld [vmem:[%s886 + $0x10] sm:$0xf]
        %v1543 = vld [vmem:[%s886 + $0x14] sm:$0xf]
        %v1544 = vld [vmem:[%s886 + $0x18] sm:$0xf]
        %v1545 = vld [vmem:[%s886 + $0x1c] sm:$0xf]
        %v1546 = vpack.c.bf16 %v1537, %v1536
        %v1547 = vld [vmem:[%s889] sm:$0x1]
        %v1549 = vperm.slane %v1547, 0
        %v1559 = vunpack.c.l.b16 %v1538
        %v1560 = vunpack.c.l.b16 %v1539
        %v1561 = vunpack.c.l.b16 %v1540
        %v1562 = vunpack.c.l.b16 %v1541
        %v1563 = vunpack.c.l.b16 %v1542
        %v1564 = vunpack.c.l.b16 %v1543
        %v1565 = vunpack.c.l.b16 %v1544
        %v1566 = vunpack.c.l.b16 %v1545
        %v1567 = vpack.c.b16 %v1560, %v1559
        %v1568 = vpack.c.b16 %v1562, %v1561
        %v1569 = vpack.c.b16 %v1564, %v1563
        %v1570 = vpack.c.b16 %v1566, %v1565
        %vm1575 = vcmask 523264
        %v1577 = vsel %vm1575, %v1546, 0
        %1579 = vmatpush.bf16.msra.mxu0 0
        %1580 = vmatpush.bf16.msra.mxu0 0
        %1581 = vmatpush.bf16.msra.mxu0 0
        %1582 = vmatpush.bf16.msra.mxu0 0
        %1583 = vmatpush.bf16.msra.mxu0 %v1570
        %1584 = vmatpush.bf16.msra.mxu0 %v1569
        %1585 = vmatpush.bf16.msra.mxu0 %v1568
        %1586 = vmatpush.bf16.msra.mxu0 %v1567
        %1587 = vmatmul.bf16.gmra.mxu0 %v1577
        %v1588 = vpop.f32.mrf.mxu0
        %v1589 = vadd.f32 %v1549, %v1588
        %v1590 = vpop.f32.mrf.mxu0
        %v1591 = vadd.f32 %v1549, %v1590
        %1592 = vdwg.mxu0
        %v1593 = vadd.f32 %v1589, %v1418
        %v1594 = vadd.f32 %v1591, %v1419
        %v1595 = vld [vmem:[%s892] sm:$0x1]
        %v1596 = vld [vmem:[%s895] sm:$0x1]
        %v1597 = vsel %vm1020, %v1593, 0.0
        %1598 = vadd.xlane.f32.xlu0 %v1597
        %v1599 = vpop.xlane.xlu0 %1598
        %v1600 = vsel %vm1020, %v1594, 0.0
        %1601 = vadd.xlane.f32.xlu0 %v1600
        %v1602 = vpop.xlane.xlu0 %1601
        %v1603 = vmul.f32 %v1599, %v1371
        %v1604 = vmul.f32 %v1602, %v1371
        %v1605 = vsub.f32 %v1593, %v1603
        %v1606 = vsub.f32 %v1594, %v1604
        %v1607 = vmul.f32 %v1605, %v1605
        %v1608 = vmul.f32 %v1606, %v1606
        %v1609 = vsel %vm1020, %v1607, 0.0
        %1610 = vadd.xlane.f32.xlu0 %v1609
        %v1611 = vpop.xlane.xlu0 %1610
        %v1612 = vsel %vm1020, %v1608, 0.0
        %1613 = vadd.xlane.f32.xlu0 %v1612
        %v1614 = vpop.xlane.xlu0 %1613
        %v1615 = vmul.f32 %v1611, %v1371
        %v1616 = vmul.f32 %v1614, %v1371
        %v1617 = vadd.f32 %v1615, 1e-12
        %v1618 = vadd.f32 %v1616, 1e-12
        %v1619 = vrsqrt.pop %v1617
        %v1620 = vmul.f32 %v1619, %v1617
        %v1621 = vmul.f32 %v1620, %v1619
        %v1622 = vmul.f32 0.5, %v1621
        %v1623 = vsub.f32 1.5, %v1622
        %v1624 = vmul.f32 %v1619, %v1623
        %vm1625 = vweird.f32 %v1617
        %vm1626 = vweird.f32 %v1619
        %vm1627 = vmor %vm1625, %vm1626
        %v1628 = vsel %vm1627, %v1619, %v1624
        %v1629 = vrsqrt.pop %v1618
        %v1630 = vmul.f32 %v1629, %v1618
        %v1631 = vmul.f32 %v1630, %v1629
        %v1632 = vmul.f32 0.5, %v1631
        %v1633 = vsub.f32 1.5, %v1632
        %v1634 = vmul.f32 %v1629, %v1633
        %vm1635 = vweird.f32 %v1618
        %vm1636 = vweird.f32 %v1629
        %vm1637 = vmor %vm1635, %vm1636
        %v1638 = vsel %vm1637, %v1629, %v1634
        %v1639 = vmul.f32 %v1605, %v1628
        %v1640 = vmul.f32 %v1606, %v1638
        %v1642 = vperm.slane %v1595, 0
        %v1644 = vmul.f32 %v1639, %v1642
        %v1645 = vmul.f32 %v1640, %v1642
        %v1647 = vperm.slane %v1596, 0
        %v1649 = vadd.f32 %v1644, %v1647
        %v1650 = vadd.f32 %v1645, %v1647
        %1651 = vst.msk [vmem:[#allocation2] sm:$0xff] %vm1020, %v1649
        %1652 = vst.msk [vmem:[#allocation2 + $0x8] sm:$0xff] %vm1020, %v1650
        %p1653 = scmp.eq.s32.totalorder %s36, 1
        // Predicated region
        $region121: #{_lambda_.1} parent=115 // pred_check
          %p1654 = pneg %p1653
        $region122: #{_lambda_.1} parent=115 // pred_check_branch
          %1656 = sbr.rel (%p1654) target = $region124
        $region123: #{_lambda_.1} parent=115 // pred_region
          %v1657 = vld [vmem:[%s18] sm:$0xf]
          %v1658 = vld [vmem:[%s18 + $0x4] sm:$0xf]
          %v1659 = vld [vmem:[%s18 + $0x8] sm:$0xf]
          %v1660 = vld [vmem:[%s18 + $0xc] sm:$0xf]
          %v1661 = vpack.c.bf16 %v1649, %v1649
          %v1662 = vpack.c.bf16 %v1650, %v1650
          %v1663 = vld [vmem:[%s19] sm:$0x1]
          %v1665 = vperm.slane %v1663, 0
          %v1669 = vunpack.c.l.b16 %v1661
          %v1670 = vunpack.c.l.b16 %v1662
          %v1671 = vrot.slane %v1670, 7
          %vm1672 = vcmask 1041409
          %v1673 = vsel %vm1672, %v1671, %v1669
          %v1674 = vpack.c.b16 %v1673, %v1673
          %v1679 = vunpack.c.l.b16 %v1657
          %v1680 = vunpack.c.l.b16 %v1658
          %v1681 = vunpack.c.l.b16 %v1659
          %v1682 = vunpack.c.l.b16 %v1660
          %v1683 = vpack.c.b16 %v1680, %v1679
          %v1684 = vpack.c.b16 %v1682, %v1681
          %v1688 = vsel %vm1020, %v1674, 0
          %1690 = vmatpush.bf16.msra.mxu0 0
          %1691 = vmatpush.bf16.msra.mxu0 0
          %1692 = vmatpush.bf16.msra.mxu0 0
          %1693 = vmatpush.bf16.msra.mxu0 0
          %1694 = vmatpush.bf16.msra.mxu0 0
          %1695 = vmatpush.bf16.msra.mxu0 0
          %1696 = vmatpush.bf16.msra.mxu0 %v1684
          %1697 = vmatpush.bf16.msra.mxu0 %v1683
          %1698 = vmatmul.bf16.gmra.mxu0 %v1688
          %v1699 = vpop.f32.mrf.mxu0
          %v1700 = vadd.f32 %v1665, %v1699
          %v1701 = vpop.f32.mrf.mxu0
          %1702 = vdwg.mxu0
          %v1703 = vtanh.pop %v1700
          %v1704 = vld [vmem:[%s20] sm:$0xff]
          %v1705 = vld [vmem:[%s20 + $0x8] sm:$0xf]
          %v1706 = vld [vmem:[%s20 + $0xc] sm:$0xff]
          %v1707 = vld [vmem:[%s20 + $0x14] sm:$0xf]
          %v1708 = vld [vmem:[%s20 + $0x18] sm:$0xff]
          %v1709 = vld [vmem:[%s20 + $0x20] sm:$0xf]
          %v1710 = vld [vmem:[%s20 + $0x24] sm:$0xff]
          %v1711 = vld [vmem:[%s20 + $0x2c] sm:$0xf]
          %v1712 = vpack.c.bf16 %v1703, %v1703
          %v1713 = vld [vmem:[%s21] sm:$0x7]
          %v1715 = vperm.slane %v1713, 0
          %v1716 = vperm.slane %v1713, 1
          %v1717 = vperm.slane %v1713, 2
          %v1729 = vunpack.c.l.b16 %v1704
          %v1730 = vunpack.c.h.b16 %v1704
          %v1731 = vunpack.c.l.b16 %v1705
          %v1732 = vunpack.c.l.b16 %v1706
          %v1733 = vunpack.c.h.b16 %v1706
          %v1734 = vunpack.c.l.b16 %v1707
          %v1735 = vunpack.c.l.b16 %v1708
          %v1736 = vunpack.c.h.b16 %v1708
          %v1737 = vunpack.c.l.b16 %v1709
          %v1738 = vunpack.c.l.b16 %v1710
          %v1739 = vunpack.c.h.b16 %v1710
          %v1740 = vunpack.c.l.b16 %v1711
          %v1741 = vpack.c.b16 %v1732, %v1729
          %v1742 = vpack.c.b16 %v1733, %v1730
          %v1743 = vpack.c.b16 %v1734, %v1731
          %v1744 = vpack.c.b16 %v1738, %v1735
          %v1745 = vpack.c.b16 %v1739, %v1736
          %v1746 = vpack.c.b16 %v1740, %v1737
          %v1754 = vsel %vm1020, %v1712, 0
          %1756 = vmatpush.bf16.msra.mxu0 0
          %1757 = vmatpush.bf16.msra.mxu0 0
          %1758 = vmatpush.bf16.msra.mxu0 0
          %1759 = vmatpush.bf16.msra.mxu0 0
          %1760 = vmatpush.bf16.msra.mxu0 0
          %1761 = vmatpush.bf16.msra.mxu0 0
          %1762 = vmatpush.bf16.msra.mxu0 %v1744
          %1763 = vmatpush.bf16.msra.mxu0 %v1741
          %1764 = vmatmul.bf16.gmra.mxu0 %v1754
          %v1765 = vpop.f32.mrf.mxu0
          %v1766 = vadd.f32 %v1715, %v1765
          %v1767 = vpop.f32.mrf.mxu0
          %1768 = vdwg.mxu0
          %1769 = vmatpush.bf16.msra.mxu0 0
          %1770 = vmatpush.bf16.msra.mxu0 0
          %1771 = vmatpush.bf16.msra.mxu0 0
          %1772 = vmatpush.bf16.msra.mxu0 0
          %1773 = vmatpush.bf16.msra.mxu0 0
          %1774 = vmatpush.bf16.msra.mxu0 0
          %1775 = vmatpush.bf16.msra.mxu0 %v1745
          %1776 = vmatpush.bf16.msra.mxu0 %v1742
          %1777 = vmatmul.bf16.gmra.mxu0 %v1754
          %v1778 = vpop.f32.mrf.mxu0
          %v1779 = vadd.f32 %v1716, %v1778
          %v1780 = vpop.f32.mrf.mxu0
          %1781 = vdwg.mxu0
          %1782 = vmatpush.bf16.msra.mxu0 0
          %1783 = vmatpush.bf16.msra.mxu0 0
          %1784 = vmatpush.bf16.msra.mxu0 0
          %1785 = vmatpush.bf16.msra.mxu0 0
          %1786 = vmatpush.bf16.msra.mxu0 0
          %1787 = vmatpush.bf16.msra.mxu0 0
          %1788 = vmatpush.bf16.msra.mxu0 %v1746
          %1789 = vmatpush.bf16.msra.mxu0 %v1743
          %1790 = vmatmul.bf16.gmra.mxu0 %v1754
          %v1791 = vpop.f32.mrf.mxu0
          %v1792 = vadd.f32 %v1717, %v1791
          %v1793 = vpop.f32.mrf.mxu0
          %1794 = vdwg.mxu0
          %v1795 = vmax.f32 %v1766, 0.0
          %v1796 = vmax.f32 %v1779, 0.0
          %v1797 = vmax.f32 %v1792, 0.0
          %v1798 = vld [vmem:[%s22] sm:$0xf]
          %v1799 = vld [vmem:[%s22 + $0x4] sm:$0xf]
          %v1800 = vld [vmem:[%s22 + $0x8] sm:$0xf]
          %v1801 = vld [vmem:[%s22 + $0xc] sm:$0xf]
          %v1802 = vld [vmem:[%s22 + $0x10] sm:$0xf]
          %v1803 = vld [vmem:[%s22 + $0x14] sm:$0xf]
          %v1804 = vld [vmem:[%s22 + $0x18] sm:$0xf]
          %v1805 = vld [vmem:[%s22 + $0x1c] sm:$0xf]
          %v1806 = vld [vmem:[%s22 + $0x20] sm:$0xf]
          %v1807 = vld [vmem:[%s22 + $0x24] sm:$0xf]
          %v1808 = vld [vmem:[%s22 + $0x28] sm:$0xf]
          %v1809 = vld [vmem:[%s22 + $0x2c] sm:$0xf]
          %v1810 = vld [vmem:[%s22 + $0x30] sm:$0xf]
          %v1811 = vld [vmem:[%s22 + $0x34] sm:$0xf]
          %v1812 = vld [vmem:[%s22 + $0x38] sm:$0xf]
          %v1813 = vld [vmem:[%s22 + $0x3c] sm:$0xf]
          %v1814 = vld [vmem:[%s22 + $0x40] sm:$0xf]
          %v1815 = vld [vmem:[%s22 + $0x44] sm:$0xf]
          %v1816 = vld [vmem:[%s22 + $0x48] sm:$0xf]
          %v1817 = vld [vmem:[%s22 + $0x4c] sm:$0xf]
          %v1818 = vld [vmem:[%s22 + $0x50] sm:$0xf]
          %v1819 = vld [vmem:[%s22 + $0x54] sm:$0xf]
          %v1820 = vld [vmem:[%s22 + $0x58] sm:$0xf]
          %v1821 = vld [vmem:[%s22 + $0x5c] sm:$0xf]
          %v1822 = vld [vmem:[%s22 + $0x60] sm:$0xf]
          %v1823 = vld [vmem:[%s22 + $0x64] sm:$0xf]
          %v1824 = vld [vmem:[%s22 + $0x68] sm:$0xf]
          %v1825 = vld [vmem:[%s22 + $0x6c] sm:$0xf]
          %v1826 = vld [vmem:[%s22 + $0x70] sm:$0xf]
          %v1827 = vld [vmem:[%s22 + $0x74] sm:$0xf]
          %v1828 = vld [vmem:[%s22 + $0x78] sm:$0xf]
          %v1829 = vld [vmem:[%s22 + $0x7c] sm:$0xf]
          %v1830 = vld [vmem:[%s22 + $0x80] sm:$0xf]
          %v1831 = vld [vmem:[%s22 + $0x84] sm:$0xf]
          %v1832 = vld [vmem:[%s22 + $0x88] sm:$0xf]
          %v1833 = vld [vmem:[%s22 + $0x8c] sm:$0xf]
          %v1834 = vld [vmem:[%s22 + $0x90] sm:$0xf]
          %v1835 = vld [vmem:[%s22 + $0x94] sm:$0xf]
          %v1836 = vld [vmem:[%s22 + $0x98] sm:$0xf]
          %v1837 = vld [vmem:[%s22 + $0x9c] sm:$0xf]
          %v1838 = vld [vmem:[%s22 + $0xa0] sm:$0xf]
          %v1839 = vld [vmem:[%s22 + $0xa4] sm:$0xf]
          %v1840 = vld [vmem:[%s22 + $0xa8] sm:$0xf]
          %v1841 = vld [vmem:[%s22 + $0xac] sm:$0xf]
          %v1842 = vld [vmem:[%s22 + $0xb0] sm:$0xf]
          %v1843 = vld [vmem:[%s22 + $0xb4] sm:$0xf]
          %v1844 = vld [vmem:[%s22 + $0xb8] sm:$0xf]
          %v1845 = vld [vmem:[%s22 + $0xbc] sm:$0xf]
          %v1846 = vpack.c.bf16 %v1795, %v1795
          %v1847 = vpack.c.bf16 %v1796, %v1796
          %v1848 = vpack.c.bf16 %v1797, %v1797
          %v1849 = vld [vmem:[%s23] sm:$0x1]
          %v1851 = vperm.slane %v1849, 0
          %v1901 = vunpack.c.l.b16 %v1798
          %v1902 = vunpack.c.l.b16 %v1799
          %v1903 = vunpack.c.l.b16 %v1800
          %v1904 = vunpack.c.l.b16 %v1801
          %v1905 = vunpack.c.l.b16 %v1802
          %v1906 = vunpack.c.l.b16 %v1803
          %v1907 = vunpack.c.l.b16 %v1804
          %v1908 = vunpack.c.l.b16 %v1805
          %v1909 = vunpack.c.l.b16 %v1806
          %v1910 = vunpack.c.l.b16 %v1807
          %v1911 = vunpack.c.l.b16 %v1808
          %v1912 = vunpack.c.l.b16 %v1809
          %v1913 = vunpack.c.l.b16 %v1810
          %v1914 = vunpack.c.l.b16 %v1811
          %v1915 = vunpack.c.l.b16 %v1812
          %v1916 = vunpack.c.l.b16 %v1813
          %v1917 = vunpack.c.l.b16 %v1814
          %v1918 = vunpack.c.l.b16 %v1815
          %v1919 = vunpack.c.l.b16 %v1816
          %v1920 = vunpack.c.l.b16 %v1817
          %v1921 = vunpack.c.l.b16 %v1818
          %v1922 = vunpack.c.l.b16 %v1819
          %v1923 = vunpack.c.l.b16 %v1820
          %v1924 = vunpack.c.l.b16 %v1821
          %v1925 = vunpack.c.l.b16 %v1822
          %v1926 = vunpack.c.l.b16 %v1823
          %v1927 = vunpack.c.l.b16 %v1824
          %v1928 = vunpack.c.l.b16 %v1825
          %v1929 = vunpack.c.l.b16 %v1826
          %v1930 = vunpack.c.l.b16 %v1827
          %v1931 = vunpack.c.l.b16 %v1828
          %v1932 = vunpack.c.l.b16 %v1829
          %v1933 = vunpack.c.l.b16 %v1830
          %v1934 = vunpack.c.l.b16 %v1831
          %v1935 = vunpack.c.l.b16 %v1832
          %v1936 = vunpack.c.l.b16 %v1833
          %v1937 = vunpack.c.l.b16 %v1834
          %v1938 = vunpack.c.l.b16 %v1835
          %v1939 = vunpack.c.l.b16 %v1836
          %v1940 = vunpack.c.l.b16 %v1837
          %v1941 = vunpack.c.l.b16 %v1838
          %v1942 = vunpack.c.l.b16 %v1839
          %v1943 = vunpack.c.l.b16 %v1840
          %v1944 = vunpack.c.l.b16 %v1841
          %v1945 = vunpack.c.l.b16 %v1842
          %v1946 = vunpack.c.l.b16 %v1843
          %v1947 = vunpack.c.l.b16 %v1844
          %v1948 = vunpack.c.l.b16 %v1845
          %v1949 = vpack.c.b16 %v1902, %v1901
          %v1950 = vpack.c.b16 %v1904, %v1903
          %v1951 = vpack.c.b16 %v1906, %v1905
          %v1952 = vpack.c.b16 %v1908, %v1907
          %v1953 = vpack.c.b16 %v1910, %v1909
          %v1954 = vpack.c.b16 %v1912, %v1911
          %v1955 = vpack.c.b16 %v1914, %v1913
          %v1956 = vpack.c.b16 %v1916, %v1915
          %v1957 = vpack.c.b16 %v1918, %v1917
          %v1958 = vpack.c.b16 %v1920, %v1919
          %v1959 = vpack.c.b16 %v1922, %v1921
          %v1960 = vpack.c.b16 %v1924, %v1923
          %v1961 = vpack.c.b16 %v1926, %v1925
          %v1962 = vpack.c.b16 %v1928, %v1927
          %v1963 = vpack.c.b16 %v1930, %v1929
          %v1964 = vpack.c.b16 %v1932, %v1931
          %v1965 = vpack.c.b16 %v1934, %v1933
          %v1966 = vpack.c.b16 %v1936, %v1935
          %v1967 = vpack.c.b16 %v1938, %v1937
          %v1968 = vpack.c.b16 %v1940, %v1939
          %v1969 = vpack.c.b16 %v1942, %v1941
          %v1970 = vpack.c.b16 %v1944, %v1943
          %v1971 = vpack.c.b16 %v1946, %v1945
          %v1972 = vpack.c.b16 %v1948, %v1947
          %1997 = vmatpush.bf16.msra.mxu0 %v1956
          %1998 = vmatpush.bf16.msra.mxu0 %v1955
          %1999 = vmatpush.bf16.msra.mxu0 %v1954
          %2000 = vmatpush.bf16.msra.mxu0 %v1953
          %2001 = vmatpush.bf16.msra.mxu0 %v1952
          %2002 = vmatpush.bf16.msra.mxu0 %v1951
          %2003 = vmatpush.bf16.msra.mxu0 %v1950
          %2004 = vmatpush.bf16.msra.mxu0 %v1949
          %2005 = vmatmul.bf16.gmra.mxu0 %v1846
          %v2006 = vpop.f32.mrf.mxu0
          %v2007 = vadd.f32 %v1851, %v2006
          %v2008 = vpop.f32.mrf.mxu0
          %2009 = vdwg.mxu0
          %2010 = vmatpush.bf16.msra.mxu0 %v1964
          %2011 = vmatpush.bf16.msra.mxu0 %v1963
          %2012 = vmatpush.bf16.msra.mxu0 %v1962
          %2013 = vmatpush.bf16.msra.mxu0 %v1961
          %2014 = vmatpush.bf16.msra.mxu0 %v1960
          %2015 = vmatpush.bf16.msra.mxu0 %v1959
          %2016 = vmatpush.bf16.msra.mxu0 %v1958
          %2017 = vmatpush.bf16.msra.mxu0 %v1957
          %2018 = vmatmul.bf16.gmra.mxu0 %v1847
          %v2019 = vpop.f32.mrf.mxu0
          %v2020 = vadd.f32 %v2007, %v2019
          %v2021 = vpop.f32.mrf.mxu0
          %2022 = vdwg.mxu0
          %2023 = vmatpush.bf16.msra.mxu0 %v1972
          %2024 = vmatpush.bf16.msra.mxu0 %v1971
          %2025 = vmatpush.bf16.msra.mxu0 %v1970
          %2026 = vmatpush.bf16.msra.mxu0 %v1969
          %2027 = vmatpush.bf16.msra.mxu0 %v1968
          %2028 = vmatpush.bf16.msra.mxu0 %v1967
          %2029 = vmatpush.bf16.msra.mxu0 %v1966
          %2030 = vmatpush.bf16.msra.mxu0 %v1965
          %2031 = vmatmul.bf16.gmra.mxu0 %v1848
          %v2032 = vpop.f32.mrf.mxu0
          %v2033 = vadd.f32 %v2020, %v2032
          %v2034 = vpop.f32.mrf.mxu0
          %2035 = vdwg.mxu0
          %2036 = vst [vmem:[#allocation3] sm:$0x3] %v2033
        $region124: #{_lambda_.1} parent=115 // pred_fallthru
          _
        // Predicated region
        $region125: #{_lambda_.1} parent=115 // pred_check
          %p2037 = pneg %p613
        $region126: #{_lambda_.1} parent=115 // pred_check_branch
          %2039 = sbr.rel (%p2037) target = $region128
        $region127: #{_lambda_.1} parent=115 // pred_region
          %2041 = vsyncadd [#allocation4], 0
          %s2043 = sshll.u32 [#allocation3], 4
          %s2044 = int_to_ptr.vmem [resolvable:$true] %s2043
          %s2045 = sshll.u32 %s24, 4
          %s2046 = int_to_ptr.hbm [resolvable:$true] %s2045
          %2048 = dma.vmem_to_hbm [thread:$0]  %s2044, 32, %s2046, [#allocation4]
        $region128: #{_lambda_.1} parent=115 // pred_fallthru
          _
        // Predicated region
        $region129: #{_lambda_.1} parent=115 // pred_check
          %p2049 = pneg %p613
        $region130: #{_lambda_.1} parent=115 // pred_check_branch
          %2051 = sbr.rel (%p2049) target = $region132
        $region131: #{_lambda_.1} parent=115 // pred_region
          %2053 = dma.done [#allocation4], 32
        $region132: #{_lambda_.1} parent=115 // pred_fallthru
          _
      $region116: #{_lambda_.1} parent=5 // pred_fallthru
        _
      %p2054 = scmp.le.s32.totalorder 2, %s31
      // Predicated region
      $region133: #{_lambda_.1} parent=5 // pred_check
        %p2055 = pneg %p2054
      $region134: #{_lambda_.1} parent=5 // pred_check_branch
        %2057 = sbr.rel (%p2055) target = $region136
      $region135: #{_lambda_.1} parent=5 // pred_region
        %s2058 = ssub.s32 %s31, 2
      $region136: #{_lambda_.1} parent=5 // pred_fallthru
        _
    $region6: #{_lambda_.1} parent=1 // loop_footer
      %s35 = sadd.s32 1, %s31
    $region7: #{_lambda_.1} parent=1 // loop_footer_branch
      %30 = sbr.rel target = $region3
    $region8: #{_lambda_.1} parent=1 // loop_exit
      _
    %2059 = vsyncpa [#allocation4], 1
    %s2060 = scalar_lea.sflag [#allocation4], 1
    %2061 = vsyncpa %s2060, 1

</llo_original>
